<compile_context>
chip_gen: v7x
topology: tpu7x:2x2x1
jax: 0.10.0
libtpu: 0.0.40
codegen_flags: <defaults>
</compile_context>

<pallas_src>
import functools

import jax
import jax.numpy as jnp
import numpy as np
from jax import lax
from jax.experimental import pallas as pl
from jax.experimental.pallas import tpu as pltpu

BN_EPS = 1e-5
LANES = 128      # TPU lane width; channel dims are zero-padded to this.


# ---------------------------------------------------------------------------
# Pallas kernels
# ---------------------------------------------------------------------------
def conv_bn_relu_pool_kernel(a_ref, w_ref, g_ref, bt_ref, o_ref,
                             sum_ref, sq_ref, scale_ref, shift_ref):
    """ConvBlock = conv (im2col matmul) + BatchNorm (batch stats) + ReLU + 2x2 pool.

    Grid = (phase, block):
      phase 0: accumulate per-channel sum / sum-of-squares over all conv pixels
      phase 1: apply BN + ReLU + 2x2 max-pool and write the pooled block

    a_ref : (4*tp, K)  bf16  im2col patches; within a block the rows are
                        [pool-pos 0 | pool-pos 1 | pool-pos 2 | pool-pos 3],
                        tp rows each (tp = pooled pixels per block).
    w_ref : (K, 128)   bf16  conv weights (out channels zero-padded to 128).
    g/bt  : (1, 128)   f32   BN gamma / beta (zero-padded).
    o_ref : (tp, 128)  bf16  pooled output block.
    """
    phase = pl.program_id(0)
    blk = pl.program_id(1)
    nblk = pl.num_programs(1)
    tp = o_ref.shape[0]

    # One fused MXU matmul covering all 4 pool positions of this block.
    y = jnp.dot(a_ref[...], w_ref[...], preferred_element_type=jnp.float32)

    @pl.when(phase == 0)
    def _():
        @pl.when(blk == 0)
        def _():
            sum_ref[...] = jnp.zeros_like(sum_ref)
            sq_ref[...] = jnp.zeros_like(sq_ref)

        sum_ref[...] = sum_ref[...] + jnp.sum(y, axis=0, keepdims=True)
        sq_ref[...] = sq_ref[...] + jnp.sum(y * y, axis=0, keepdims=True)

        @pl.when(blk == nblk - 1)
        def _():
            n_tot = 4.0 * tp * nblk                    # total conv pixels N*H*W
            mean = sum_ref[...] / n_tot
            var = sq_ref[...] / n_tot - mean * mean    # biased (training-mode)
            inv = lax.rsqrt(var + BN_EPS)
            scale = g_ref[...] * inv
            scale_ref[...] = scale
            shift_ref[...] = bt_ref[...] - mean * scale

        # defined write-back during the stats pass; overwritten in phase 1
        o_ref[...] = jnp.zeros_like(o_ref)

    @pl.when(phase == 1)
    def _():
        z = jnp.maximum(y * scale_ref[...] + shift_ref[...], 0.0)   # BN + ReLU
        p0 = z[0 * tp:1 * tp]
        p1 = z[1 * tp:2 * tp]
        p2 = z[2 * tp:3 * tp]
        p3 = z[3 * tp:4 * tp]
        o_ref[...] = jnp.maximum(jnp.maximum(p0, p1),
                                 jnp.maximum(p2, p3)).astype(o_ref.dtype)


def conv_bn_pool_fc_kernel(a_ref, w_ref, g_ref, bt_ref,
                           fw1_ref, fb1_ref, fw2_ref, fb2_ref, o_ref):
    """Second ConvBlock (spatial collapses to 1x1 after its pool) fused with the
    fc1 -> ReLU -> fc2 -> sigmoid head.  Single invocation, everything resident.

    a_ref  : (4*N, K)   bf16   rows = [pool-pos 0 | 1 | 2 | 3], N rows each
    w_ref  : (K, 128)   bf16   conv weights (in/out channels zero-padded)
    fw1_ref: (128, 128) f32    fc1 weight, zero-padded (in 64->128, out 8->128)
    fb1_ref: (1, 128)   f32
    fw2_ref: (1, 128)   f32    fc2 weight as a lane row (8 real entries, rest 0)
    fb2_ref: (1, 1)     f32
    o_ref  : (N, 1)     f32
    """
    n = o_ref.shape[0]

    y = jnp.dot(a_ref[...], w_ref[...], preferred_element_type=jnp.float32)
    n_tot = 4.0 * n
    mean = jnp.sum(y, axis=0, keepdims=True) / n_tot
    var = jnp.sum(y * y, axis=0, keepdims=True) / n_tot - mean * mean
    inv = lax.rsqrt(var + BN_EPS)
    scale = g_ref[...] * inv
    shift = bt_ref[...] - mean * scale
    z = jnp.maximum(y * scale + shift, 0.0)                         # BN + ReLU
    feat = jnp.maximum(jnp.maximum(z[0:n], z[n:2 * n]),             # 2x2 maxpool
                       jnp.maximum(z[2 * n:3 * n], z[3 * n:4 * n]))  # (N, 128)

    # fc1 on the MXU (lane-dense 128x128 weight); fc2 as a VPU multiply +
    # lane reduce (K=8 / 1-lane output has ~zero MXU utilization); sigmoid = EUP.
    h = jnp.maximum(jnp.dot(feat, fw1_ref[...],
                            preferred_element_type=jnp.float32) + fb1_ref[...],
                    0.0)                                            # (N, 128)
    logit = jnp.sum(h * fw2_ref[...], axis=-1, keepdims=True) + fb2_ref[...]
    o_ref[...] = jax.nn.sigmoid(logit)


# ---------------------------------------------------------------------------
# Wrappers (glue: im2col / padding / layout plumbing in plain JAX)
# ---------------------------------------------------------------------------
_VMEM = functools.partial(pl.BlockSpec, memory_space=pltpu.MemorySpace.VMEM)


def _im2col_pool_layout(x_nhwc, pad):
    """3x3 / stride-1 im2col with rows grouped for a following 2x2 max-pool.

    Returns (4, P, 9*C) where P = N*(Ho//2)*(Wo//2); leading axis indexes the
    pixel position inside each 2x2 pool window; rows are ordered (n, oh, ow).
    """
    n, h, w, c = x_nhwc.shape
    xp = jnp.pad(x_nhwc, ((0, 0), (pad, pad), (pad, pad), (0, 0)))
    ho, wo = h + 2 * pad - 2, w + 2 * pad - 2
    assert ho % 2 == 0 and wo % 2 == 0, "2x2 pool needs even conv output size"
    taps = [xp[:, dy:dy + ho, dx:dx + wo, :]
            for dy in range(3) for dx in range(3)]
    patches = jnp.stack(taps, axis=3).reshape(n, ho, wo, 9 * c)
    patches = patches.reshape(n, ho // 2, 2, wo // 2, 2, 9 * c)
    patches = patches.transpose(2, 4, 0, 1, 3, 5)      # (ph, pw, n, oh, ow, K)
    p_out = n * (ho // 2) * (wo // 2)
    return patches.reshape(4, p_out, 9 * c), (n, ho // 2, wo // 2)


def _pick_tp(p, cap):
    """Pooled rows per grid block: whole array if it fits, else the largest
    divisor of p that is a multiple of 8 (sublane aligned) and <= cap."""
    if p <= cap:
        return p
    best = None
    for tp in range(8, cap + 1, 8):
        if p % tp == 0:
            best = tp
    return best if best is not None else p


def conv_block(x_nhwc, w_hwio, gamma, beta, pad, *, block_rows=512):
    """Gridded ConvBlock (conv1).  block_rows=512 keeps per-step VMEM well
    under the scoped limit on every generation (v5e 16MiB default included)."""
    a, (n, oh, ow) = _im2col_pool_layout(x_nhwc, pad)
    p, k = a.shape[1], a.shape[2]
    cout = w_hwio.shape[-1]

    tp = _pick_tp(p, block_rows)
    nblk = p // tp
    # Row layout: [block][pool-position][pixel] so each grid block is (4*tp, K).
    a = (a.reshape(4, nblk, tp, k).transpose(1, 0, 2, 3)
          .reshape(4 * p, k).astype(jnp.bfloat16))
    w_mat = w_hwio.reshape(9 * w_hwio.shape[2], cout).astype(jnp.bfloat16)

    flops = 2 * 2 * (4 * p) * k * cout            # matmul runs in both phases
    bytes_acc = 2 * a.size * 2 + w_mat.size * 2 + p * cout * 2 + 4 * cout * 4

    pooled = pl.pallas_call(
        conv_bn_relu_pool_kernel,
        out_shape=jax.ShapeDtypeStruct((p, cout), jnp.bfloat16),
        grid_spec=pltpu.PrefetchScalarGridSpec(
            num_scalar_prefetch=0,
            grid=(2, nblk),                        # (phase, pooled-pixel block)
            in_specs=[
                pl.BlockSpec((4 * tp, k), lambda ph, b: (b, 0)),
                pl.BlockSpec((k, cout), lambda ph, b: (0, 0)),
                pl.BlockSpec((1, cout), lambda ph, b: (0, 0)),
                pl.BlockSpec((1, cout), lambda ph, b: (0, 0)),
            ],
            out_specs=pl.BlockSpec((tp, cout), lambda ph, b: (b, 0)),
            scratch_shapes=[pltpu.VMEM((1, cout), jnp.float32)] * 4,
        ),
        compiler_params=pltpu.CompilerParams(
            # BN stats accumulate across blocks -> both axes sequential.
            dimension_semantics=("arbitrary", "arbitrary"),
            vmem_limit_bytes=32 * 1024 * 1024,
        ),
        cost_estimate=pl.CostEstimate(flops=flops, transcendentals=cout,
                                      bytes_accessed=bytes_acc),
    )(a, w_mat, gamma.reshape(1, -1), beta.reshape(1, -1))

    return pooled.reshape(n, oh, ow, cout)


def conv_block_fc_head(x_nhwc, w_hwio, gamma, beta, fw1, fb1, fw2_row, fb2, pad):
    """Fused conv2 + BN + ReLU + pool + fc1 + ReLU + fc2 + sigmoid."""
    a, (n, oh, ow) = _im2col_pool_layout(x_nhwc, pad)
    assert oh == 1 and ow == 1, "FC fusion assumes the pool collapses to 1x1"
    p, k = a.shape[1], a.shape[2]
    cout = w_hwio.shape[-1]

    a = a.reshape(4 * p, k).astype(jnp.bfloat16)
    w_mat = w_hwio.reshape(9 * w_hwio.shape[2], cout).astype(jnp.bfloat16)

    flops = 2 * (4 * p) * k * cout + 2 * p * cout * fw1.shape[1]
    bytes_acc = a.size * 2 + w_mat.size * 2 + fw1.size * 4 + p * 4 + 6 * cout * 4

    return pl.pallas_call(
        conv_bn_pool_fc_kernel,
        out_shape=jax.ShapeDtypeStruct((p, 1), jnp.float32),
        in_specs=[_VMEM()] * 8,
        out_specs=_VMEM(),
        compiler_params=pltpu.CompilerParams(vmem_limit_bytes=32 * 1024 * 1024),
        cost_estimate=pl.CostEstimate(flops=flops, transcendentals=cout + 2 * p,
                                      bytes_accessed=bytes_acc),
    )(a, w_mat, gamma.reshape(1, -1), beta.reshape(1, -1),
      fw1, fb1.reshape(1, -1), fw2_row, jnp.reshape(fb2, (1, 1)))


def relation_network_forward(x_nchw, p):
    f32 = jnp.float32
    # layout: PyTorch NCHW input -> NHWC so channels ride the 128-lane axis.
    x = jnp.transpose(x_nchw, (0, 2, 3, 1))

    cpad = LANES - p['w1'].shape[-1]              # lane-dense: Cout 64 -> 128
    w1 = jnp.pad(p['w1'], ((0, 0), (0, 0), (0, 0), (0, cpad)))
    g1 = jnp.pad(p['g1'], (0, cpad))
    b1 = jnp.pad(p['beta1'], (0, cpad))
    # conv2: pad in-channels (to match conv1's padded output) and out-channels.
    w2 = jnp.pad(p['w2'], ((0, 0), (0, 0), (0, cpad), (0, cpad)))
    g2 = jnp.pad(p['g2'], (0, cpad))
    b2 = jnp.pad(p['beta2'], (0, cpad))
    # FC head padded to 128 lanes; zero rows/cols contribute nothing.
    fin, fhid = p['fw1'].shape
    fw1 = jnp.pad(p['fw1'], ((0, LANES - fin), (0, LANES - fhid))).astype(f32)
    fb1 = jnp.pad(p['fb1'], (0, LANES - fhid)).astype(f32)
    fw2 = jnp.pad(p['fw2'][:, 0], (0, LANES - fhid)).reshape(1, -1).astype(f32)
    fb2 = p['fb2'].astype(f32)

    # NOTE: conv biases cb1/cb2 are intentionally NOT passed to the kernels:
    # training-mode BatchNorm subtracts the batch mean, cancelling them exactly.
    y = conv_block(x, w1, g1, b1, pad=1)                                 # layer1
    out = conv_block_fc_head(y, w2, g2, b2, fw1, fb1, fw2, fb2, pad=1)   # layer2+fc
    return out


# ---------------------------------------------------------------------------
# Deterministic parameter init + pure-JAX reference for verification
# ---------------------------------------------------------------------------
def init_params(key, feature_dim=64):
    ks = jax.random.split(key, 10)

    def nrm(k, shape, s):
        return jax.random.normal(k, shape, jnp.float32) * s

    return dict(
        w1=nrm(ks[0], (3, 3, 128, 64), 0.05),      # conv1 HWIO
        cb1=nrm(ks[1], (64,), 0.05),
        g1=1.0 + nrm(ks[2], (64,), 0.05),
        beta1=nrm(ks[3], (64,), 0.05),
        w2=nrm(ks[4], (3, 3, 64, 64), 0.05),       # conv2 HWIO
        cb2=nrm(ks[5], (64,), 0.05),
        g2=1.0 + nrm(ks[6], (64,), 0.05),
        beta2=nrm(ks[7], (64,), 0.05),
        fw1=nrm(ks[8], (feature_dim, 8), 0.1),     # fc1: Linear(feature_dim, 8)
        fb1=jnp.full((8,), 0.01, jnp.float32),
        fw2=nrm(ks[9], (8, 1), 0.1),               # fc2: Linear(8, 1)
        fb2=jnp.zeros((1,), jnp.float32),
    )


def reference_forward(x_nchw, p):
    x = jnp.transpose(x_nchw, (0, 2, 3, 1))

    def block(x, w, b, g, bt):
        y = jax.lax.conv_general_dilated(
            x, w, window_strides=(1, 1), padding=[(1, 1), (1, 1)],
            dimension_numbers=('NHWC', 'HWIO', 'NHWC')) + b
        mean = jnp.mean(y, axis=(0, 1, 2), keepdims=True)
        var = jnp.mean((y - mean) ** 2, axis=(0, 1, 2), keepdims=True)
        y = (y - mean) * jax.lax.rsqrt(var + BN_EPS) * g + bt
        y = jnp.maximum(y, 0.0)
        n, h, w_, c = y.shape
        return y.reshape(n, h // 2, 2, w_ // 2, 2, c).max(axis=(2, 4))

    y = block(x, p['w1'], p['cb1'], p['g1'], p['beta1'])
    y = block(y, p['w2'], p['cb2'], p['g2'], p['beta2'])
    f = y.reshape(y.shape[0], -1)
    h = jnp.maximum(f @ p['fw1'] + p['fb1'], 0.0)
    return jax.nn.sigmoid(h @ p['fw2'] + p['fb2'])


if __name__ == "__main__":
    key = jax.random.PRNGKey(0)
    k_x, k_p = jax.random.split(key)
    # feature_dim = 64 -> fc1 = Linear(64, 8).  Input (N, 128, 4, 4) so that
    # after two (conv pad=1, 2x2 pool) blocks the flattened feature is 64*1*1.
    x = jax.random.normal(k_x, (2, 128, 4, 4), jnp.float32)
    params = init_params(k_p, feature_dim=64)

    out = jax.block_until_ready(jax.jit(relation_network_forward)(x, params))
    ref = jax.block_until_ready(reference_forward(x, params))

    assert out.shape == (2, 1), out.shape
    # bf16 matmul operands -> looser tolerance than the pure-f32 reference.
    np.testing.assert_allclose(np.asarray(out), np.asarray(ref),
                               rtol=2e-2, atol=2e-2)
    print("KERNEL_OK")
</pallas_src>

<mosaic_0001>
module attributes {stable_mosaic.version = 11 : i64} {
  func.func @conv_bn_relu_pool_kernel(%arg0: i32, %arg1: i32, %arg2: memref<32x1152xbf16, #tpu.memory_space<vmem>>, %arg3: memref<1152x128xbf16, #tpu.memory_space<vmem>>, %arg4: memref<1x128xf32, #tpu.memory_space<vmem>>, %arg5: memref<1x128xf32, #tpu.memory_space<vmem>>, %arg6: memref<8x128xbf16, #tpu.memory_space<vmem>>, %arg7: memref<1x128xf32, #tpu.memory_space<vmem>>, %arg8: memref<1x128xf32, #tpu.memory_space<vmem>>, %arg9: memref<1x128xf32, #tpu.memory_space<vmem>>, %arg10: memref<1x128xf32, #tpu.memory_space<vmem>>) attributes {dimension_semantics = [#tpu.dimension_semantics<arbitrary>, #tpu.dimension_semantics<arbitrary>], iteration_bounds = array<i64: 2, 1>, scalar_prefetch = 0 : i64, scratch_operands = 4 : i64, tpu.core_type = #tpu.core_type<tc>, window_params = [{transform_indices = @transform_0, window_bounds = array<i64: 32, 1152>}, {pipeline_mode = #tpu.pipeline_mode<synchronous>, transform_indices = @transform_1, window_bounds = array<i64: 1152, 128>}, {pipeline_mode = #tpu.pipeline_mode<synchronous>, transform_indices = @transform_2, window_bounds = array<i64: 1, 128>}, {pipeline_mode = #tpu.pipeline_mode<synchronous>, transform_indices = @transform_3, window_bounds = array<i64: 1, 128>}, {transform_indices = @transform_4, window_bounds = array<i64: 8, 128>}]} {
    %c0 = arith.constant 0 : index
    %c0_0 = arith.constant 0 : index
    %0 = vector.load %arg2[%c0, %c0_0] : memref<32x1152xbf16, #tpu.memory_space<vmem>>, vector<32x1152xbf16>
    %c0_1 = arith.constant 0 : index
    %c0_2 = arith.constant 0 : index
    %1 = vector.load %arg3[%c0_1, %c0_2] : memref<1152x128xbf16, #tpu.memory_space<vmem>>, vector<1152x128xbf16>
    %cst = arith.constant dense<0.000000e+00> : vector<32x128xf32>
    %2 = tpu.matmul %0, %1, %cst {dimension_numbers = #tpu.dot_dimension_numbers<[1], [0], [0], [1], [0, 0, 1, 1], [], []>} : vector<32x1152xbf16>, vector<1152x128xbf16>, vector<32x128xf32> -> vector<32x128xf32>
    %c0_i32 = arith.constant 0 : i32
    %3 = arith.cmpi eq, %arg0, %c0_i32 : i32
    %4 = arith.extui %3 : i1 to i32
    %c0_i32_3 = arith.constant 0 : i32
    %5 = arith.cmpi ne, %4, %c0_i32_3 : i32
    scf.if %5 {
      %c0_i32_5 = arith.constant 0 : i32
      %9 = arith.cmpi eq, %arg1, %c0_i32_5 : i32
      %10 = arith.extui %9 : i1 to i32
      %c0_i32_6 = arith.constant 0 : i32
      %11 = arith.cmpi ne, %10, %c0_i32_6 : i32
      scf.if %11 {
        %cst_22 = arith.constant 0.000000e+00 : f32
        %28 = vector.broadcast %cst_22 : f32 to vector<1x128xf32>
        %c0_23 = arith.constant 0 : index
        %c0_24 = arith.constant 0 : index
        %29 = vector.load %arg7[%c0_23, %c0_24] : memref<1x128xf32, #tpu.memory_space<vmem>>, vector<1x128xf32>
        tpu.vector_store %arg7[%c0_23, %c0_24], %28 {strides = array<i32>} : memref<1x128xf32, #tpu.memory_space<vmem>>, vector<1x128xf32>,
        %cst_25 = arith.constant 0.000000e+00 : f32
        %30 = vector.broadcast %cst_25 : f32 to vector<1x128xf32>
        %c0_26 = arith.constant 0 : index
        %c0_27 = arith.constant 0 : index
        %31 = vector.load %arg8[%c0_26, %c0_27] : memref<1x128xf32, #tpu.memory_space<vmem>>, vector<1x128xf32>
        tpu.vector_store %arg8[%c0_26, %c0_27], %30 {strides = array<i32>} : memref<1x128xf32, #tpu.memory_space<vmem>>, vector<1x128xf32>,
      } else {
      }
      %c0_7 = arith.constant 0 : index
      %c0_8 = arith.constant 0 : index
      %12 = vector.load %arg7[%c0_7, %c0_8] : memref<1x128xf32, #tpu.memory_space<vmem>>, vector<1x128xf32>
      %cst_9 = arith.constant dense<0.000000e+00> : vector<128xf32>
      %13 = vector.multi_reduction <add>, %2, %cst_9 [0] : vector<32x128xf32> to vector<128xf32>
      %14 = vector.shape_cast %13 : vector<128xf32> to vector<1x128xf32>
      %15 = arith.addf %12, %14 : vector<1x128xf32>
      %c0_10 = arith.constant 0 : index
      %c0_11 = arith.constant 0 : index
      %16 = vector.load %arg7[%c0_10, %c0_11] : memref<1x128xf32, #tpu.memory_space<vmem>>, vector<1x128xf32>
      tpu.vector_store %arg7[%c0_10, %c0_11], %15 {strides = array<i32>} : memref<1x128xf32, #tpu.memory_space<vmem>>, vector<1x128xf32>,
      %c0_12 = arith.constant 0 : index
      %c0_13 = arith.constant 0 : index
      %17 = vector.load %arg8[%c0_12, %c0_13] : memref<1x128xf32, #tpu.memory_space<vmem>>, vector<1x128xf32>
      %18 = arith.mulf %2, %2 : vector<32x128xf32>
      %cst_14 = arith.constant dense<0.000000e+00> : vector<128xf32>
      %19 = vector.multi_reduction <add>, %18, %cst_14 [0] : vector<32x128xf32> to vector<128xf32>
      %20 = vector.shape_cast %19 : vector<128xf32> to vector<1x128xf32>
      %21 = arith.addf %17, %20 : vector<1x128xf32>
      %c0_15 = arith.constant 0 : index
      %c0_16 = arith.constant 0 : index
      %22 = vector.load %arg8[%c0_15, %c0_16] : memref<1x128xf32, #tpu.memory_space<vmem>>, vector<1x128xf32>
      tpu.vector_store %arg8[%c0_15, %c0_16], %21 {strides = array<i32>} : memref<1x128xf32, #tpu.memory_space<vmem>>, vector<1x128xf32>,
      %c0_i32_17 = arith.constant 0 : i32
      %23 = arith.cmpi eq, %arg1, %c0_i32_17 : i32
      %24 = arith.extui %23 : i1 to i32
      %c0_i32_18 = arith.constant 0 : i32
      %25 = arith.cmpi ne, %24, %c0_i32_18 : i32
      scf.if %25 {
        %c0_22 = arith.constant 0 : index
        %c0_23 = arith.constant 0 : index
        %28 = vector.load %arg7[%c0_22, %c0_23] : memref<1x128xf32, #tpu.memory_space<vmem>>, vector<1x128xf32>
        %cst_24 = arith.constant 3.200000e+01 : f32
        %29 = vector.broadcast %cst_24 : f32 to vector<1x128xf32>
        %30 = arith.divf %28, %29 : vector<1x128xf32>
        %c0_25 = arith.constant 0 : index
        %c0_26 = arith.constant 0 : index
        %31 = vector.load %arg8[%c0_25, %c0_26] : memref<1x128xf32, #tpu.memory_space<vmem>>, vector<1x128xf32>
        %cst_27 = arith.constant 3.200000e+01 : f32
        %32 = vector.broadcast %cst_27 : f32 to vector<1x128xf32>
        %33 = arith.divf %31, %32 : vector<1x128xf32>
        %34 = arith.mulf %30, %30 : vector<1x128xf32>
        %35 = arith.subf %33, %34 : vector<1x128xf32>
        %cst_28 = arith.constant 9.99999974E-6 : f32
        %36 = vector.broadcast %cst_28 : f32 to vector<1x128xf32>
        %37 = arith.addf %35, %36 : vector<1x128xf32>
        %38 = math.rsqrt %37 : vector<1x128xf32>
        %c0_29 = arith.constant 0 : index
        %c0_30 = arith.constant 0 : index
        %39 = vector.load %arg4[%c0_29, %c0_30] : memref<1x128xf32, #tpu.memory_space<vmem>>, vector<1x128xf32>
        %40 = arith.mulf %39, %38 : vector<1x128xf32>
        %c0_31 = arith.constant 0 : index
        %c0_32 = arith.constant 0 : index
        %41 = vector.load %arg9[%c0_31, %c0_32] : memref<1x128xf32, #tpu.memory_space<vmem>>, vector<1x128xf32>
        tpu.vector_store %arg9[%c0_31, %c0_32], %40 {strides = array<i32>} : memref<1x128xf32, #tpu.memory_space<vmem>>, vector<1x128xf32>,
        %c0_33 = arith.constant 0 : index
        %c0_34 = arith.constant 0 : index
        %42 = vector.load %arg5[%c0_33, %c0_34] : memref<1x128xf32, #tpu.memory_space<vmem>>, vector<1x128xf32>
        %43 = arith.mulf %30, %40 : vector<1x128xf32>
        %44 = arith.subf %42, %43 : vector<1x128xf32>
        %c0_35 = arith.constant 0 : index
        %c0_36 = arith.constant 0 : index
        %45 = vector.load %arg10[%c0_35, %c0_36] : memref<1x128xf32, #tpu.memory_space<vmem>>, vector<1x128xf32>
        tpu.vector_store %arg10[%c0_35, %c0_36], %44 {strides = array<i32>} : memref<1x128xf32, #tpu.memory_space<vmem>>, vector<1x128xf32>,
      } else {
      }
      %cst_19 = arith.constant 0.000000e+00 : bf16
      %26 = vector.broadcast %cst_19 : bf16 to vector<8x128xbf16>
      %c0_20 = arith.constant 0 : index
      %c0_21 = arith.constant 0 : index
      %27 = vector.load %arg6[%c0_20, %c0_21] : memref<8x128xbf16, #tpu.memory_space<vmem>>, vector<8x128xbf16>
      tpu.vector_store %arg6[%c0_20, %c0_21], %26 {strides = array<i32>} : memref<8x128xbf16, #tpu.memory_space<vmem>>, vector<8x128xbf16>,
    } else {
    }
    %c1_i32 = arith.constant 1 : i32
    %6 = arith.cmpi eq, %arg0, %c1_i32 : i32
    %7 = arith.extui %6 : i1 to i32
    %c0_i32_4 = arith.constant 0 : i32
    %8 = arith.cmpi ne, %7, %c0_i32_4 : i32
    scf.if %8 {
      %c0_5 = arith.constant 0 : index
      %c0_6 = arith.constant 0 : index
      %9 = vector.load %arg9[%c0_5, %c0_6] : memref<1x128xf32, #tpu.memory_space<vmem>>, vector<1x128xf32>
      %10 = vector.broadcast %9 : vector<1x128xf32> to vector<32x128xf32>
      %11 = arith.mulf %2, %10 : vector<32x128xf32>
      %c0_7 = arith.constant 0 : index
      %c0_8 = arith.constant 0 : index
      %12 = vector.load %arg10[%c0_7, %c0_8] : memref<1x128xf32, #tpu.memory_space<vmem>>, vector<1x128xf32>
      %13 = vector.broadcast %12 : vector<1x128xf32> to vector<32x128xf32>
      %14 = arith.addf %11, %13 : vector<32x128xf32>
      %cst_9 = arith.constant 0.000000e+00 : f32
      %15 = vector.broadcast %cst_9 : f32 to vector<32x128xf32>
      %16 = arith.maximumf %14, %15 : vector<32x128xf32>
      %17 = vector.extract_strided_slice %16 {offsets = [0, 0], sizes = [8, 128], strides = [1, 1]} : vector<32x128xf32> to vector<8x128xf32>
      %18 = vector.extract_strided_slice %16 {offsets = [8, 0], sizes = [8, 128], strides = [1, 1]} : vector<32x128xf32> to vector<8x128xf32>
      %19 = vector.extract_strided_slice %16 {offsets = [16, 0], sizes = [8, 128], strides = [1, 1]} : vector<32x128xf32> to vector<8x128xf32>
      %20 = vector.extract_strided_slice %16 {offsets = [24, 0], sizes = [8, 128], strides = [1, 1]} : vector<32x128xf32> to vector<8x128xf32>
      %21 = arith.maximumf %17, %18 : vector<8x128xf32>
      %22 = arith.maximumf %19, %20 : vector<8x128xf32>
      %23 = arith.maximumf %21, %22 : vector<8x128xf32>
      %24 = arith.truncf %23 : vector<8x128xf32> to vector<8x128xbf16>
      %c0_10 = arith.constant 0 : index
      %c0_11 = arith.constant 0 : index
      %25 = vector.load %arg6[%c0_10, %c0_11] : memref<8x128xbf16, #tpu.memory_space<vmem>>, vector<8x128xbf16>
      tpu.vector_store %arg6[%c0_10, %c0_11], %24 {strides = array<i32>} : memref<8x128xbf16, #tpu.memory_space<vmem>>, vector<8x128xbf16>,
    } else {
    }
    return
  }
  func.func @transform_0(%arg0: i32, %arg1: i32) -> (i32, i32) {
    %c0_i32 = arith.constant 0 : i32
    %c0_i32_0 = arith.constant 0 : i32
    return %arg1, %c0_i32 : i32, i32
  }
  func.func @transform_1(%arg0: i32, %arg1: i32) -> (i32, i32) {
    %c0_i32 = arith.constant 0 : i32
    %c0_i32_0 = arith.constant 0 : i32
    %c0_i32_1 = arith.constant 0 : i32
    return %c0_i32, %c0_i32_0 : i32, i32
  }
  func.func @transform_2(%arg0: i32, %arg1: i32) -> (i32, i32) {
    %c0_i32 = arith.constant 0 : i32
    %c0_i32_0 = arith.constant 0 : i32
    %c0_i32_1 = arith.constant 0 : i32
    return %c0_i32, %c0_i32_0 : i32, i32
  }
  func.func @transform_3(%arg0: i32, %arg1: i32) -> (i32, i32) {
    %c0_i32 = arith.constant 0 : i32
    %c0_i32_0 = arith.constant 0 : i32
    %c0_i32_1 = arith.constant 0 : i32
    return %c0_i32, %c0_i32_0 : i32, i32
  }
  func.func @transform_4(%arg0: i32, %arg1: i32) -> (i32, i32) {
    %c0_i32 = arith.constant 0 : i32
    %c0_i32_0 = arith.constant 0 : i32
    return %arg1, %c0_i32 : i32, i32
  }
}

module attributes {stable_mosaic.version = 11 : i64} {
  func.func @conv_bn_pool_fc_kernel(%arg0: memref<8x1152xbf16, #tpu.memory_space<vmem>>, %arg1: memref<1152x128xbf16, #tpu.memory_space<vmem>>, %arg2: memref<1x128xf32, #tpu.memory_space<vmem>>, %arg3: memref<1x128xf32, #tpu.memory_space<vmem>>, %arg4: memref<128x128xf32, #tpu.memory_space<vmem>>, %arg5: memref<1x128xf32, #tpu.memory_space<vmem>>, %arg6: memref<1x128xf32, #tpu.memory_space<vmem>>, %arg7: memref<1x1xf32, #tpu.memory_space<vmem>>, %arg8: memref<2x1xf32, #tpu.memory_space<vmem>>) attributes {dimension_semantics = [], scalar_prefetch = 0 : i64, scratch_operands = 0 : i64, tpu.core_type = #tpu.core_type<tc>} {
    %c0 = arith.constant 0 : index
    %c0_0 = arith.constant 0 : index
    %0 = vector.load %arg0[%c0, %c0_0] : memref<8x1152xbf16, #tpu.memory_space<vmem>>, vector<8x1152xbf16>
    %c0_1 = arith.constant 0 : index
    %c0_2 = arith.constant 0 : index
    %1 = vector.load %arg1[%c0_1, %c0_2] : memref<1152x128xbf16, #tpu.memory_space<vmem>>, vector<1152x128xbf16>
    %cst = arith.constant dense<0.000000e+00> : vector<8x128xf32>
    %2 = tpu.matmul %0, %1, %cst {dimension_numbers = #tpu.dot_dimension_numbers<[1], [0], [0], [1], [0, 0, 1, 1], [], []>} : vector<8x1152xbf16>, vector<1152x128xbf16>, vector<8x128xf32> -> vector<8x128xf32>
    %cst_3 = arith.constant dense<0.000000e+00> : vector<128xf32>
    %3 = vector.multi_reduction <add>, %2, %cst_3 [0] : vector<8x128xf32> to vector<128xf32>
    %4 = vector.shape_cast %3 : vector<128xf32> to vector<1x128xf32>
    %cst_4 = arith.constant 8.000000e+00 : f32
    %5 = vector.broadcast %cst_4 : f32 to vector<1x128xf32>
    %6 = arith.divf %4, %5 : vector<1x128xf32>
    %7 = arith.mulf %2, %2 : vector<8x128xf32>
    %cst_5 = arith.constant dense<0.000000e+00> : vector<128xf32>
    %8 = vector.multi_reduction <add>, %7, %cst_5 [0] : vector<8x128xf32> to vector<128xf32>
    %9 = vector.shape_cast %8 : vector<128xf32> to vector<1x128xf32>
    %cst_6 = arith.constant 8.000000e+00 : f32
    %10 = vector.broadcast %cst_6 : f32 to vector<1x128xf32>
    %11 = arith.divf %9, %10 : vector<1x128xf32>
    %12 = arith.mulf %6, %6 : vector<1x128xf32>
    %13 = arith.subf %11, %12 : vector<1x128xf32>
    %cst_7 = arith.constant 9.99999974E-6 : f32
    %14 = vector.broadcast %cst_7 : f32 to vector<1x128xf32>
    %15 = arith.addf %13, %14 : vector<1x128xf32>
    %16 = math.rsqrt %15 : vector<1x128xf32>
    %c0_8 = arith.constant 0 : index
    %c0_9 = arith.constant 0 : index
    %17 = vector.load %arg2[%c0_8, %c0_9] : memref<1x128xf32, #tpu.memory_space<vmem>>, vector<1x128xf32>
    %18 = arith.mulf %17, %16 : vector<1x128xf32>
    %c0_10 = arith.constant 0 : index
    %c0_11 = arith.constant 0 : index
    %19 = vector.load %arg3[%c0_10, %c0_11] : memref<1x128xf32, #tpu.memory_space<vmem>>, vector<1x128xf32>
    %20 = arith.mulf %6, %18 : vector<1x128xf32>
    %21 = arith.subf %19, %20 : vector<1x128xf32>
    %22 = vector.broadcast %18 : vector<1x128xf32> to vector<8x128xf32>
    %23 = arith.mulf %2, %22 : vector<8x128xf32>
    %24 = vector.broadcast %21 : vector<1x128xf32> to vector<8x128xf32>
    %25 = arith.addf %23, %24 : vector<8x128xf32>
    %cst_12 = arith.constant 0.000000e+00 : f32
    %26 = vector.broadcast %cst_12 : f32 to vector<8x128xf32>
    %27 = arith.maximumf %25, %26 : vector<8x128xf32>
    %28 = vector.extract_strided_slice %27 {offsets = [0, 0], sizes = [2, 128], strides = [1, 1]} : vector<8x128xf32> to vector<2x128xf32>
    %29 = vector.extract_strided_slice %27 {offsets = [2, 0], sizes = [2, 128], strides = [1, 1]} : vector<8x128xf32> to vector<2x128xf32>
    %30 = arith.maximumf %28, %29 : vector<2x128xf32>
    %31 = vector.extract_strided_slice %27 {offsets = [4, 0], sizes = [2, 128], strides = [1, 1]} : vector<8x128xf32> to vector<2x128xf32>
    %32 = vector.extract_strided_slice %27 {offsets = [6, 0], sizes = [2, 128], strides = [1, 1]} : vector<8x128xf32> to vector<2x128xf32>
    %33 = arith.maximumf %31, %32 : vector<2x128xf32>
    %34 = arith.maximumf %30, %33 : vector<2x128xf32>
    %c0_13 = arith.constant 0 : index
    %c0_14 = arith.constant 0 : index
    %35 = vector.load %arg4[%c0_13, %c0_14] : memref<128x128xf32, #tpu.memory_space<vmem>>, vector<128x128xf32>
    %cst_15 = arith.constant dense<0.000000e+00> : vector<2x128xf32>
    %36 = tpu.matmul %34, %35, %cst_15 {dimension_numbers = #tpu.dot_dimension_numbers<[1], [0], [0], [1], [0, 0, 1, 1], [], []>} : vector<2x128xf32>, vector<128x128xf32>, vector<2x128xf32> -> vector<2x128xf32>
    %c0_16 = arith.constant 0 : index
    %c0_17 = arith.constant 0 : index
    %37 = vector.load %arg5[%c0_16, %c0_17] : memref<1x128xf32, #tpu.memory_space<vmem>>, vector<1x128xf32>
    %38 = vector.broadcast %37 : vector<1x128xf32> to vector<2x128xf32>
    %39 = arith.addf %36, %38 : vector<2x128xf32>
    %cst_18 = arith.constant 0.000000e+00 : f32
    %40 = vector.broadcast %cst_18 : f32 to vector<2x128xf32>
    %41 = arith.maximumf %39, %40 : vector<2x128xf32>
    %c0_19 = arith.constant 0 : index
    %c0_20 = arith.constant 0 : index
    %42 = vector.load %arg6[%c0_19, %c0_20] : memref<1x128xf32, #tpu.memory_space<vmem>>, vector<1x128xf32>
    %43 = vector.broadcast %42 : vector<1x128xf32> to vector<2x128xf32>
    %44 = arith.mulf %41, %43 : vector<2x128xf32>
    %cst_21 = arith.constant dense<0.000000e+00> : vector<2xf32>
    %45 = vector.multi_reduction <add>, %44, %cst_21 [1] : vector<2x128xf32> to vector<2xf32>
    %46 = vector.shape_cast %45 : vector<2xf32> to vector<2x1xf32>
    %c0_22 = arith.constant 0 : index
    %c0_23 = arith.constant 0 : index
    %47 = vector.load %arg7[%c0_22, %c0_23] : memref<1x1xf32, #tpu.memory_space<vmem>>, vector<1x1xf32>
    %48 = vector.broadcast %47 : vector<1x1xf32> to vector<2x1xf32>
    %49 = arith.addf %46, %48 : vector<2x1xf32>
    %50 = arith.negf %49 : vector<2x1xf32>
    %51 = math.exp %50 : vector<2x1xf32>
    %cst_24 = arith.constant 1.000000e+00 : f32
    %52 = vector.broadcast %cst_24 : f32 to vector<2x1xf32>
    %53 = arith.addf %52, %51 : vector<2x1xf32>
    %54 = arith.divf %52, %53 : vector<2x1xf32>
    %c0_25 = arith.constant 0 : index
    %c0_26 = arith.constant 0 : index
    %55 = vector.load %arg8[%c0_25, %c0_26] : memref<2x1xf32, #tpu.memory_space<vmem>>, vector<2x1xf32>
    tpu.vector_store %arg8[%c0_25, %c0_26], %54 {strides = array<i32>} : memref<2x1xf32, #tpu.memory_space<vmem>>, vector<2x1xf32>,
    return
  }
}

</mosaic_0001>

<llo_original>
// kernel: relation_network_forward.2
$region0: #{relation_network_forward.2}
  #allocation0 [shape = 'u32[]', space=smem, size = 0x4, offset = 0x4, fixed_abs, tag = 'smem constant byte address 0x4 - core index']
  #allocation1 [shape = 'u32[144,128]{1,0:T(1,128)}', space=vmem, size = 0x12000, scoped, tag = 'internal scratch']
  #allocation2 [shape = 'f32[1,128]{1,0:T(1,128)}', space=vmem, size = 0x200, scoped, tag = 'scratch operand']
  #allocation3 [shape = 'f32[1,128]{1,0:T(1,128)}', space=vmem, size = 0x200, scoped, tag = 'scratch operand']
  #allocation4 [shape = 'f32[1,128]{1,0:T(1,128)}', space=vmem, size = 0x200, scoped, tag = 'scratch operand']
  #allocation5 [shape = 'f32[1,128]{1,0:T(1,128)}', space=vmem, size = 0x200, scoped, tag = 'scratch operand']
  %s0 = inlined_call_operand.vmem [shape: bf16[32,1152], index: 0, kind: input, shape index: {}]
  %s1 = inlined_call_operand.vmem [shape: bf16[1152,128], index: 1, kind: input, shape index: {}]
  %s2 = inlined_call_operand.vmem [shape: f32[1,128], index: 2, kind: input, shape index: {}]
  %s3 = inlined_call_operand.vmem [shape: f32[1,128], index: 3, kind: input, shape index: {}]
  %s4 = inlined_call_operand.vmem [shape: bf16[8,128], index: 4, kind: output, shape index: {}]
  %s5 = sld [smem:[#allocation0]]
  $region65: #{relation_network_forward.2} parent=0
    _
  %s7 = ssub.s32 1, %s5
  %s8 = scalar_select 0, %s7, %s5
  loop: start=0, step=1, limit=4
  $region2: #{relation_network_forward.2} parent=0 // loop_pre_header
    _
  $region3: #{relation_network_forward.2} parent=0 // loop_header
    %s10 = sphi 0, %s14
    %p11 = scmp.ge.s32.totalorder %s10, 4
    %s17 = sphi 0, %s29
    %s18 = sphi 0, %s25
    %s19 = sphi 0, %s17
    %s20 = sphi 0, %s18
    %s21 = sphi 0, %s19
    %s22 = sphi 0, %s20
    %s32 = sphi 0, %s34
    %s35 = sphi 0, %s32
    %s36 = sphi 0, %s35
    %s52 = sphi 0, %s36
    %s56 = sphi 0, %s56
    %s58 = sphi 0, %s56
    %s59 = sphi 0, %s58
    %s73 = sphi 0, %s59
    %s77 = sphi 0, %s77
    %s79 = sphi 0, %s77
    %s80 = sphi 0, %s79
    %s94 = sphi 0, %s80
    %s98 = sphi 0, %s98
    %s100 = sphi 0, %s98
    %s101 = sphi 0, %s100
    %s115 = sphi 0, %s101
    %s121 = sphi 0, %s123
    %s124 = sphi 0, %s121
    %s125 = sphi 0, %s124
    %s141 = sphi 0, %s125
  $region4: #{relation_network_forward.2} parent=0 // loop_header_branch
    %13 = sbr.rel (%p11) target = $region8
  $region5: #{relation_network_forward.2} parent=0 // loop_body
    %s15 = ssub.s32 %s10, 1
    %s16 = ssub.s32 %s10, 2
    %s23 = sadd.s32 1, %s18
    %p24 = scmp.ge.s32.totalorder %s23, 1
    %s25 = scalar_select %p24, 0, %s23
    %s26 = sadd.s32 1, %s17
    %s27 = scalar_select %p24, %s26, %s17
    %p28 = scmp.ge.s32.totalorder %s27, 2
    %s29 = scalar_select %p28, 0, %s27
    %s30 = ssub.s32 %s18, %s25
    %p31 = scmp.eq.s32.totalorder %s30, 0
    %s33 = sadd.s32 %s32, 1
    %s34 = scalar_select %p31, %s32, %s33
    %p37 = pneg %p31
    %p38 = scmp.eq.s32.totalorder %s10, 1
    %p39 = por %p37, %p38
    %p40 = scmp.ne.s32.totalorder %s32, %s35
    %p41 = scmp.eq.s32.totalorder %s10, 0
    %p42 = por %p40, %p41
    %p43 = scmp.ne.s32.totalorder %s32, %s35
    %p44 = scmp.eq.s32.totalorder %s15, 1
    %p45 = por %p43, %p44
    %p46 = scmp.ne.s32.totalorder %s35, %s36
    %p47 = scmp.eq.s32.totalorder %s15, 0
    %p48 = por %p46, %p47
    %p49 = scmp.ne.s32.totalorder %s35, %s36
    %p50 = scmp.eq.s32.totalorder %s16, 1
    %p51 = por %p49, %p50
    %p53 = scmp.ne.s32.totalorder %s36, %s52
    %p54 = scmp.eq.s32.totalorder %s16, 0
    %p55 = por %p53, %p54
    %s57 = sadd.s32 %s56, 1
    %p60 = scmp.eq.s32.totalorder %s10, 1
    %p61 = scmp.ne.s32.totalorder %s56, %s58
    %p62 = scmp.eq.s32.totalorder %s10, 0
    %p63 = por %p61, %p62
    %p64 = scmp.ne.s32.totalorder %s56, %s58
    %p65 = scmp.eq.s32.totalorder %s15, 1
    %p66 = por %p64, %p65
    %p67 = scmp.ne.s32.totalorder %s58, %s59
    %p68 = scmp.eq.s32.totalorder %s15, 0
    %p69 = por %p67, %p68
    %p70 = scmp.ne.s32.totalorder %s58, %s59
    %p71 = scmp.eq.s32.totalorder %s16, 1
    %p72 = por %p70, %p71
    %p74 = scmp.ne.s32.totalorder %s59, %s73
    %p75 = scmp.eq.s32.totalorder %s16, 0
    %p76 = por %p74, %p75
    %s78 = sadd.s32 %s77, 1
    %p81 = scmp.eq.s32.totalorder %s10, 1
    %p82 = scmp.ne.s32.totalorder %s77, %s79
    %p83 = scmp.eq.s32.totalorder %s10, 0
    %p84 = por %p82, %p83
    %p85 = scmp.ne.s32.totalorder %s77, %s79
    %p86 = scmp.eq.s32.totalorder %s15, 1
    %p87 = por %p85, %p86
    %p88 = scmp.ne.s32.totalorder %s79, %s80
    %p89 = scmp.eq.s32.totalorder %s15, 0
    %p90 = por %p88, %p89
    %p91 = scmp.ne.s32.totalorder %s79, %s80
    %p92 = scmp.eq.s32.totalorder %s16, 1
    %p93 = por %p91, %p92
    %p95 = scmp.ne.s32.totalorder %s80, %s94
    %p96 = scmp.eq.s32.totalorder %s16, 0
    %p97 = por %p95, %p96
    %s99 = sadd.s32 %s98, 1
    %p102 = scmp.eq.s32.totalorder %s10, 1
    %p103 = scmp.ne.s32.totalorder %s98, %s100
    %p104 = scmp.eq.s32.totalorder %s10, 0
    %p105 = por %p103, %p104
    %p106 = scmp.ne.s32.totalorder %s98, %s100
    %p107 = scmp.eq.s32.totalorder %s15, 1
    %p108 = por %p106, %p107
    %p109 = scmp.ne.s32.totalorder %s100, %s101
    %p110 = scmp.eq.s32.totalorder %s15, 0
    %p111 = por %p109, %p110
    %p112 = scmp.ne.s32.totalorder %s100, %s101
    %p113 = scmp.eq.s32.totalorder %s16, 1
    %p114 = por %p112, %p113
    %p116 = scmp.ne.s32.totalorder %s101, %s115
    %p117 = scmp.eq.s32.totalorder %s16, 0
    %p118 = por %p116, %p117
    %s119 = ssub.s32 %s18, %s25
    %p120 = scmp.eq.s32.totalorder %s119, 0
    %s122 = sadd.s32 %s121, 1
    %s123 = scalar_select %p120, %s121, %s122
    %p126 = pneg %p120
    %p127 = scmp.eq.s32.totalorder %s10, 1
    %p128 = por %p126, %p127
    %p129 = scmp.ne.s32.totalorder %s121, %s124
    %p130 = scmp.eq.s32.totalorder %s10, 0
    %p131 = por %p129, %p130
    %p132 = scmp.ne.s32.totalorder %s121, %s124
    %p133 = scmp.eq.s32.totalorder %s15, 1
    %p134 = por %p132, %p133
    %p135 = scmp.ne.s32.totalorder %s124, %s125
    %p136 = scmp.eq.s32.totalorder %s15, 0
    %p137 = por %p135, %p136
    %p138 = scmp.ne.s32.totalorder %s124, %s125
    %p139 = scmp.eq.s32.totalorder %s16, 1
    %p140 = por %p138, %p139
    %p142 = scmp.ne.s32.totalorder %s125, %s141
    %p143 = scmp.eq.s32.totalorder %s16, 0
    %p144 = por %p142, %p143
    %p145 = scmp.le.s32.totalorder 1, %s10
    %p146 = scmp.lt.s32.totalorder %s10, 3
    %p147 = pnand %p145, %p146
    %p148 = pneg %p147
    // Predicated region
    $region9: #{relation_network_forward.2} parent=5 // pred_check
      _
    $region10: #{relation_network_forward.2} parent=5 // pred_check_branch
      %150 = sbr.rel (%p147) target = $region12
    $region11: #{relation_network_forward.2} parent=5 // pred_region
      %s151 = ssub.s32 %s10, 1
      // Predicated region
      $region13: #{relation_network_forward.2} parent=11 // pred_check
        %p152 = pneg %p48
      $region14: #{relation_network_forward.2} parent=11 // pred_check_branch
        %154 = sbr.rel (%p152) target = $region16
      $region15: #{relation_network_forward.2} parent=11 // pred_region
        %s155 = smul.u32 4, %s20
        %p156 = scmp.lt.s32.totalorder %s155, 3
        %s157 = scalar_select %p156, %s155, 3
        %s158 = smul.addr %s157, 9
        %s159 = smul.addr %s158, 4
        %s160 = scalar_lea.vmem %s0, %s159
        %s161 = smul.u32 4, %s20
      $region16: #{relation_network_forward.2} parent=11 // pred_fallthru
        _
      // Predicated region
      $region17: #{relation_network_forward.2} parent=11 // pred_check
        %p162 = pneg %p69
      $region18: #{relation_network_forward.2} parent=11 // pred_check_branch
        %164 = sbr.rel (%p162) target = $region20
      $region19: #{relation_network_forward.2} parent=11 // pred_region
        _
      $region20: #{relation_network_forward.2} parent=11 // pred_fallthru
        _
      // Predicated region
      $region21: #{relation_network_forward.2} parent=11 // pred_check
        %p165 = pneg %p90
      $region22: #{relation_network_forward.2} parent=11 // pred_check_branch
        %167 = sbr.rel (%p165) target = $region24
      $region23: #{relation_network_forward.2} parent=11 // pred_region
        _
      $region24: #{relation_network_forward.2} parent=11 // pred_fallthru
        _
      // Predicated region
      $region25: #{relation_network_forward.2} parent=11 // pred_check
        %p168 = pneg %p111
      $region26: #{relation_network_forward.2} parent=11 // pred_check_branch
        %170 = sbr.rel (%p168) target = $region28
      $region27: #{relation_network_forward.2} parent=11 // pred_region
        _
      $region28: #{relation_network_forward.2} parent=11 // pred_fallthru
        _
    $region12: #{relation_network_forward.2} parent=5 // pred_fallthru
      _
    %p171 = scmp.lt.s32.totalorder %s10, 2
    // Predicated region
    $region29: #{relation_network_forward.2} parent=5 // pred_check
      %p172 = pneg %p171
    $region30: #{relation_network_forward.2} parent=5 // pred_check_branch
      %174 = sbr.rel (%p172) target = $region32
    $region31: #{relation_network_forward.2} parent=5 // pred_region
      _
    $region32: #{relation_network_forward.2} parent=5 // pred_fallthru
      _
    %p175 = scmp.le.s32.totalorder 1, %s10
    %p176 = scmp.lt.s32.totalorder %s10, 3
    %p177 = pnand %p175, %p176
    %p178 = pneg %p177
    // Predicated region
    $region33: #{relation_network_forward.2} parent=5 // pred_check
      _
    $region34: #{relation_network_forward.2} parent=5 // pred_check_branch
      %180 = sbr.rel (%p177) target = $region36
    $region35: #{relation_network_forward.2} parent=5 // pred_region
      %s181 = ssub.s32 %s10, 1
      %s182 = smul.u32 4, %s20
      %p183 = scmp.lt.s32.totalorder %s182, 3
      %s184 = scalar_select %p183, %s182, 3
      %s185 = smul.addr %s184, 9
      %s186 = smul.addr %s185, 4
      %s187 = scalar_lea.vmem %s0, %s186
      %p188 = pneg %p48
      %p189 = pneg %p45
      %p190 = pneg %p69
      %p191 = pneg %p66
      %p192 = pneg %p90
      %p193 = pneg %p87
      %p194 = pneg %p111
      %p195 = pneg %p108
      %p196 = pneg %p137
      %p197 = pneg %p134
      %p198 = scmp.lt.s32.totalorder %s20, 0
      %s199 = scalar_select %p198, %s20, 0
      %s200 = smul.addr %s199, 4
      %s201 = scalar_lea.vmem %s4, %s200
      %s202 = smul.u32 4, %s20
      %p203 = scmp.lt.s32.totalorder %s202, 3
      %s204 = scalar_select %p203, %s202, 3
      %s205 = smul.addr %s204, 9
      %s206 = smul.addr %s205, 4
      %s207 = scalar_lea.vmem %s0, %s206
      %s208 = smul.u32 4, %s20
      %p209 = scmp.lt.s32.totalorder %s20, 0
      %s210 = scalar_select %p209, %s20, 0
      %s211 = smul.addr %s210, 4
      %s212 = scalar_lea.vmem %s4, %s211
      %v214 = vld [vmem:[%s207] sm:$0xff]
      %v215 = vld [vmem:[%s207 + $0x8] sm:$0xff]
      %v216 = vld [vmem:[%s207 + $0x10] sm:$0xff]
      %v217 = vld [vmem:[%s207 + $0x18] sm:$0xff]
      %v218 = vld [vmem:[%s207 + $0x20] sm:$0xf]
      %v219 = vld [vmem:[%s207 + $0x24] sm:$0xff]
      %v220 = vld [vmem:[%s207 + $0x2c] sm:$0xff]
      %v221 = vld [vmem:[%s207 + $0x34] sm:$0xff]
      %v222 = vld [vmem:[%s207 + $0x3c] sm:$0xff]
      %v223 = vld [vmem:[%s207 + $0x44] sm:$0xf]
      %v224 = vld [vmem:[%s207 + $0x48] sm:$0xff]
      %v225 = vld [vmem:[%s207 + $0x50] sm:$0xff]
      %v226 = vld [vmem:[%s207 + $0x58] sm:$0xff]
      %v227 = vld [vmem:[%s207 + $0x60] sm:$0xff]
      %v228 = vld [vmem:[%s207 + $0x68] sm:$0xf]
      %v229 = vld [vmem:[%s207 + $0x6c] sm:$0xff]
      %v230 = vld [vmem:[%s207 + $0x74] sm:$0xff]
      %v231 = vld [vmem:[%s207 + $0x7c] sm:$0xff]
      %v232 = vld [vmem:[%s207 + $0x84] sm:$0xff]
      %v233 = vld [vmem:[%s207 + $0x8c] sm:$0xf]
      %v234 = vld [vmem:[%s1] sm:$0xf]
      %v235 = vld [vmem:[%s1 + $0x4] sm:$0xf]
      %v236 = vld [vmem:[%s1 + $0x8] sm:$0xf]
      %v237 = vld [vmem:[%s1 + $0xc] sm:$0xf]
      %v238 = vld [vmem:[%s1 + $0x10] sm:$0xf]
      %v239 = vld [vmem:[%s1 + $0x14] sm:$0xf]
      %v240 = vld [vmem:[%s1 + $0x18] sm:$0xf]
      %v241 = vld [vmem:[%s1 + $0x1c] sm:$0xf]
      %v242 = vld [vmem:[%s1 + $0x20] sm:$0xf]
      %v243 = vld [vmem:[%s1 + $0x24] sm:$0xf]
      %v244 = vld [vmem:[%s1 + $0x28] sm:$0xf]
      %v245 = vld [vmem:[%s1 + $0x2c] sm:$0xf]
      %v246 = vld [vmem:[%s1 + $0x30] sm:$0xf]
      %v247 = vld [vmem:[%s1 + $0x34] sm:$0xf]
      %v248 = vld [vmem:[%s1 + $0x38] sm:$0xf]
      %v249 = vld [vmem:[%s1 + $0x3c] sm:$0xf]
      %v250 = vld [vmem:[%s1 + $0x40] sm:$0xf]
      %v251 = vld [vmem:[%s1 + $0x44] sm:$0xf]
      %v252 = vld [vmem:[%s1 + $0x48] sm:$0xf]
      %v253 = vld [vmem:[%s1 + $0x4c] sm:$0xf]
      %v254 = vld [vmem:[%s1 + $0x50] sm:$0xf]
      %v255 = vld [vmem:[%s1 + $0x54] sm:$0xf]
      %v256 = vld [vmem:[%s1 + $0x58] sm:$0xf]
      %v257 = vld [vmem:[%s1 + $0x5c] sm:$0xf]
      %v258 = vld [vmem:[%s1 + $0x60] sm:$0xf]
      %v259 = vld [vmem:[%s1 + $0x64] sm:$0xf]
      %v260 = vld [vmem:[%s1 + $0x68] sm:$0xf]
      %v261 = vld [vmem:[%s1 + $0x6c] sm:$0xf]
      %v262 = vld [vmem:[%s1 + $0x70] sm:$0xf]
      %v263 = vld [vmem:[%s1 + $0x74] sm:$0xf]
      %v264 = vld [vmem:[%s1 + $0x78] sm:$0xf]
      %v265 = vld [vmem:[%s1 + $0x7c] sm:$0xf]
      %v266 = vld [vmem:[%s1 + $0x80] sm:$0xf]
      %v267 = vld [vmem:[%s1 + $0x84] sm:$0xf]
      %v268 = vld [vmem:[%s1 + $0x88] sm:$0xf]
      %v269 = vld [vmem:[%s1 + $0x8c] sm:$0xf]
      %v270 = vld [vmem:[%s1 + $0x90] sm:$0xf]
      %v271 = vld [vmem:[%s1 + $0x94] sm:$0xf]
      %v272 = vld [vmem:[%s1 + $0x98] sm:$0xf]
      %v273 = vld [vmem:[%s1 + $0x9c] sm:$0xf]
      %v274 = vld [vmem:[%s1 + $0xa0] sm:$0xf]
      %v275 = vld [vmem:[%s1 + $0xa4] sm:$0xf]
      %v276 = vld [vmem:[%s1 + $0xa8] sm:$0xf]
      %v277 = vld [vmem:[%s1 + $0xac] sm:$0xf]
      %v278 = vld [vmem:[%s1 + $0xb0] sm:$0xf]
      %v279 = vld [vmem:[%s1 + $0xb4] sm:$0xf]
      %v280 = vld [vmem:[%s1 + $0xb8] sm:$0xf]
      %v281 = vld [vmem:[%s1 + $0xbc] sm:$0xf]
      %v282 = vld [vmem:[%s1 + $0xc0] sm:$0xf]
      %v283 = vld [vmem:[%s1 + $0xc4] sm:$0xf]
      %v284 = vld [vmem:[%s1 + $0xc8] sm:$0xf]
      %v285 = vld [vmem:[%s1 + $0xcc] sm:$0xf]
      %v286 = vld [vmem:[%s1 + $0xd0] sm:$0xf]
      %v287 = vld [vmem:[%s1 + $0xd4] sm:$0xf]
      %v288 = vld [vmem:[%s1 + $0xd8] sm:$0xf]
      %v289 = vld [vmem:[%s1 + $0xdc] sm:$0xf]
      %v290 = vld [vmem:[%s1 + $0xe0] sm:$0xf]
      %v291 = vld [vmem:[%s1 + $0xe4] sm:$0xf]
      %v292 = vld [vmem:[%s1 + $0xe8] sm:$0xf]
      %v293 = vld [vmem:[%s1 + $0xec] sm:$0xf]
      %v294 = vld [vmem:[%s1 + $0xf0] sm:$0xf]
      %v295 = vld [vmem:[%s1 + $0xf4] sm:$0xf]
      %v296 = vld [vmem:[%s1 + $0xf8] sm:$0xf]
      %v297 = vld [vmem:[%s1 + $0xfc] sm:$0xf]
      %v298 = vld [vmem:[%s1 + $0x100] sm:$0xf]
      %v299 = vld [vmem:[%s1 + $0x104] sm:$0xf]
      %v300 = vld [vmem:[%s1 + $0x108] sm:$0xf]
      %v301 = vld [vmem:[%s1 + $0x10c] sm:$0xf]
      %v302 = vld [vmem:[%s1 + $0x110] sm:$0xf]
      %v303 = vld [vmem:[%s1 + $0x114] sm:$0xf]
      %v304 = vld [vmem:[%s1 + $0x118] sm:$0xf]
      %v305 = vld [vmem:[%s1 + $0x11c] sm:$0xf]
      %v306 = vld [vmem:[%s1 + $0x120] sm:$0xf]
      %v307 = vld [vmem:[%s1 + $0x124] sm:$0xf]
      %v308 = vld [vmem:[%s1 + $0x128] sm:$0xf]
      %v309 = vld [vmem:[%s1 + $0x12c] sm:$0xf]
      %v310 = vld [vmem:[%s1 + $0x130] sm:$0xf]
      %v311 = vld [vmem:[%s1 + $0x134] sm:$0xf]
      %v312 = vld [vmem:[%s1 + $0x138] sm:$0xf]
      %v313 = vld [vmem:[%s1 + $0x13c] sm:$0xf]
      %v314 = vld [vmem:[%s1 + $0x140] sm:$0xf]
      %v315 = vld [vmem:[%s1 + $0x144] sm:$0xf]
      %v316 = vld [vmem:[%s1 + $0x148] sm:$0xf]
      %v317 = vld [vmem:[%s1 + $0x14c] sm:$0xf]
      %v318 = vld [vmem:[%s1 + $0x150] sm:$0xf]
      %v319 = vld [vmem:[%s1 + $0x154] sm:$0xf]
      %v320 = vld [vmem:[%s1 + $0x158] sm:$0xf]
      %v321 = vld [vmem:[%s1 + $0x15c] sm:$0xf]
      %v322 = vld [vmem:[%s1 + $0x160] sm:$0xf]
      %v323 = vld [vmem:[%s1 + $0x164] sm:$0xf]
      %v324 = vld [vmem:[%s1 + $0x168] sm:$0xf]
      %v325 = vld [vmem:[%s1 + $0x16c] sm:$0xf]
      %v326 = vld [vmem:[%s1 + $0x170] sm:$0xf]
      %v327 = vld [vmem:[%s1 + $0x174] sm:$0xf]
      %v328 = vld [vmem:[%s1 + $0x178] sm:$0xf]
      %v329 = vld [vmem:[%s1 + $0x17c] sm:$0xf]
      %v330 = vld [vmem:[%s1 + $0x180] sm:$0xf]
      %v331 = vld [vmem:[%s1 + $0x184] sm:$0xf]
      %v332 = vld [vmem:[%s1 + $0x188] sm:$0xf]
      %v333 = vld [vmem:[%s1 + $0x18c] sm:$0xf]
      %v334 = vld [vmem:[%s1 + $0x190] sm:$0xf]
      %v335 = vld [vmem:[%s1 + $0x194] sm:$0xf]
      %v336 = vld [vmem:[%s1 + $0x198] sm:$0xf]
      %v337 = vld [vmem:[%s1 + $0x19c] sm:$0xf]
      %v338 = vld [vmem:[%s1 + $0x1a0] sm:$0xf]
      %v339 = vld [vmem:[%s1 + $0x1a4] sm:$0xf]
      %v340 = vld [vmem:[%s1 + $0x1a8] sm:$0xf]
      %v341 = vld [vmem:[%s1 + $0x1ac] sm:$0xf]
      %v342 = vld [vmem:[%s1 + $0x1b0] sm:$0xf]
      %v343 = vld [vmem:[%s1 + $0x1b4] sm:$0xf]
      %v344 = vld [vmem:[%s1 + $0x1b8] sm:$0xf]
      %v345 = vld [vmem:[%s1 + $0x1bc] sm:$0xf]
      %v346 = vld [vmem:[%s1 + $0x1c0] sm:$0xf]
      %v347 = vld [vmem:[%s1 + $0x1c4] sm:$0xf]
      %v348 = vld [vmem:[%s1 + $0x1c8] sm:$0xf]
      %v349 = vld [vmem:[%s1 + $0x1cc] sm:$0xf]
      %v350 = vld [vmem:[%s1 + $0x1d0] sm:$0xf]
      %v351 = vld [vmem:[%s1 + $0x1d4] sm:$0xf]
      %v352 = vld [vmem:[%s1 + $0x1d8] sm:$0xf]
      %v353 = vld [vmem:[%s1 + $0x1dc] sm:$0xf]
      %v354 = vld [vmem:[%s1 + $0x1e0] sm:$0xf]
      %v355 = vld [vmem:[%s1 + $0x1e4] sm:$0xf]
      %v356 = vld [vmem:[%s1 + $0x1e8] sm:$0xf]
      %v357 = vld [vmem:[%s1 + $0x1ec] sm:$0xf]
      %v358 = vld [vmem:[%s1 + $0x1f0] sm:$0xf]
      %v359 = vld [vmem:[%s1 + $0x1f4] sm:$0xf]
      %v360 = vld [vmem:[%s1 + $0x1f8] sm:$0xf]
      %v361 = vld [vmem:[%s1 + $0x1fc] sm:$0xf]
      %v362 = vld [vmem:[%s1 + $0x200] sm:$0xf]
      %v363 = vld [vmem:[%s1 + $0x204] sm:$0xf]
      %v364 = vld [vmem:[%s1 + $0x208] sm:$0xf]
      %v365 = vld [vmem:[%s1 + $0x20c] sm:$0xf]
      %v366 = vld [vmem:[%s1 + $0x210] sm:$0xf]
      %v367 = vld [vmem:[%s1 + $0x214] sm:$0xf]
      %v368 = vld [vmem:[%s1 + $0x218] sm:$0xf]
      %v369 = vld [vmem:[%s1 + $0x21c] sm:$0xf]
      %v370 = vld [vmem:[%s1 + $0x220] sm:$0xf]
      %v371 = vld [vmem:[%s1 + $0x224] sm:$0xf]
      %v372 = vld [vmem:[%s1 + $0x228] sm:$0xf]
      %v373 = vld [vmem:[%s1 + $0x22c] sm:$0xf]
      %v374 = vld [vmem:[%s1 + $0x230] sm:$0xf]
      %v375 = vld [vmem:[%s1 + $0x234] sm:$0xf]
      %v376 = vld [vmem:[%s1 + $0x238] sm:$0xf]
      %v377 = vld [vmem:[%s1 + $0x23c] sm:$0xf]
      %v398 = vunpack.c.l.b16 %v214
      %v399 = vunpack.c.h.b16 %v214
      %v400 = vunpack.c.l.b16 %v215
      %v401 = vunpack.c.h.b16 %v215
      %v402 = vunpack.c.l.b16 %v216
      %v403 = vunpack.c.h.b16 %v216
      %v404 = vunpack.c.l.b16 %v217
      %v405 = vunpack.c.h.b16 %v217
      %v406 = vunpack.c.l.b16 %v218
      %v407 = vunpack.c.l.b16 %v219
      %v408 = vunpack.c.h.b16 %v219
      %v409 = vunpack.c.l.b16 %v220
      %v410 = vunpack.c.h.b16 %v220
      %v411 = vunpack.c.l.b16 %v221
      %v412 = vunpack.c.h.b16 %v221
      %v413 = vunpack.c.l.b16 %v222
      %v414 = vunpack.c.h.b16 %v222
      %v415 = vunpack.c.l.b16 %v223
      %v416 = vunpack.c.l.b16 %v224
      %v417 = vunpack.c.h.b16 %v224
      %v418 = vunpack.c.l.b16 %v225
      %v419 = vunpack.c.h.b16 %v225
      %v420 = vunpack.c.l.b16 %v226
      %v421 = vunpack.c.h.b16 %v226
      %v422 = vunpack.c.l.b16 %v227
      %v423 = vunpack.c.h.b16 %v227
      %v424 = vunpack.c.l.b16 %v228
      %v425 = vunpack.c.l.b16 %v229
      %v426 = vunpack.c.h.b16 %v229
      %v427 = vunpack.c.l.b16 %v230
      %v428 = vunpack.c.h.b16 %v230
      %v429 = vunpack.c.l.b16 %v231
      %v430 = vunpack.c.h.b16 %v231
      %v431 = vunpack.c.l.b16 %v232
      %v432 = vunpack.c.h.b16 %v232
      %v433 = vunpack.c.l.b16 %v233
      %v434 = vpack.c.b16 %v407, %v398
      %v435 = vpack.c.b16 %v408, %v399
      %v436 = vpack.c.b16 %v409, %v400
      %v437 = vpack.c.b16 %v410, %v401
      %v438 = vpack.c.b16 %v411, %v402
      %v439 = vpack.c.b16 %v412, %v403
      %v440 = vpack.c.b16 %v413, %v404
      %v441 = vpack.c.b16 %v414, %v405
      %v442 = vpack.c.b16 %v415, %v406
      %v443 = vpack.c.b16 %v425, %v416
      %v444 = vpack.c.b16 %v426, %v417
      %v445 = vpack.c.b16 %v427, %v418
      %v446 = vpack.c.b16 %v428, %v419
      %v447 = vpack.c.b16 %v429, %v420
      %v448 = vpack.c.b16 %v430, %v421
      %v449 = vpack.c.b16 %v431, %v422
      %v450 = vpack.c.b16 %v432, %v423
      %v451 = vpack.c.b16 %v433, %v424
      %v614 = vunpack.c.l.b16 %v234
      %v615 = vunpack.c.l.b16 %v235
      %v616 = vunpack.c.l.b16 %v236
      %v617 = vunpack.c.l.b16 %v237
      %v618 = vunpack.c.l.b16 %v238
      %v619 = vunpack.c.l.b16 %v239
      %v620 = vunpack.c.l.b16 %v240
      %v621 = vunpack.c.l.b16 %v241
      %v622 = vunpack.c.l.b16 %v242
      %v623 = vunpack.c.l.b16 %v243
      %v624 = vunpack.c.l.b16 %v244
      %v625 = vunpack.c.l.b16 %v245
      %v626 = vunpack.c.l.b16 %v246
      %v627 = vunpack.c.l.b16 %v247
      %v628 = vunpack.c.l.b16 %v248
      %v629 = vunpack.c.l.b16 %v249
      %v630 = vunpack.c.l.b16 %v250
      %v631 = vunpack.c.l.b16 %v251
      %v632 = vunpack.c.l.b16 %v252
      %v633 = vunpack.c.l.b16 %v253
      %v634 = vunpack.c.l.b16 %v254
      %v635 = vunpack.c.l.b16 %v255
      %v636 = vunpack.c.l.b16 %v256
      %v637 = vunpack.c.l.b16 %v257
      %v638 = vunpack.c.l.b16 %v258
      %v639 = vunpack.c.l.b16 %v259
      %v640 = vunpack.c.l.b16 %v260
      %v641 = vunpack.c.l.b16 %v261
      %v642 = vunpack.c.l.b16 %v262
      %v643 = vunpack.c.l.b16 %v263
      %v644 = vunpack.c.l.b16 %v264
      %v645 = vunpack.c.l.b16 %v265
      %v646 = vunpack.c.l.b16 %v266
      %v647 = vunpack.c.l.b16 %v267
      %v648 = vunpack.c.l.b16 %v268
      %v649 = vunpack.c.l.b16 %v269
      %v650 = vunpack.c.l.b16 %v270
      %v651 = vunpack.c.l.b16 %v271
      %v652 = vunpack.c.l.b16 %v272
      %v653 = vunpack.c.l.b16 %v273
      %v654 = vunpack.c.l.b16 %v274
      %v655 = vunpack.c.l.b16 %v275
      %v656 = vunpack.c.l.b16 %v276
      %v657 = vunpack.c.l.b16 %v277
      %v658 = vunpack.c.l.b16 %v278
      %v659 = vunpack.c.l.b16 %v279
      %v660 = vunpack.c.l.b16 %v280
      %v661 = vunpack.c.l.b16 %v281
      %v662 = vunpack.c.l.b16 %v282
      %v663 = vunpack.c.l.b16 %v283
      %v664 = vunpack.c.l.b16 %v284
      %v665 = vunpack.c.l.b16 %v285
      %v666 = vunpack.c.l.b16 %v286
      %v667 = vunpack.c.l.b16 %v287
      %v668 = vunpack.c.l.b16 %v288
      %v669 = vunpack.c.l.b16 %v289
      %v670 = vunpack.c.l.b16 %v290
      %v671 = vunpack.c.l.b16 %v291
      %v672 = vunpack.c.l.b16 %v292
      %v673 = vunpack.c.l.b16 %v293
      %v674 = vunpack.c.l.b16 %v294
      %v675 = vunpack.c.l.b16 %v295
      %v676 = vunpack.c.l.b16 %v296
      %v677 = vunpack.c.l.b16 %v297
      %v678 = vunpack.c.l.b16 %v298
      %v679 = vunpack.c.l.b16 %v299
      %v680 = vunpack.c.l.b16 %v300
      %v681 = vunpack.c.l.b16 %v301
      %v682 = vunpack.c.l.b16 %v302
      %v683 = vunpack.c.l.b16 %v303
      %v684 = vunpack.c.l.b16 %v304
      %v685 = vunpack.c.l.b16 %v305
      %v686 = vunpack.c.l.b16 %v306
      %v687 = vunpack.c.l.b16 %v307
      %v688 = vunpack.c.l.b16 %v308
      %v689 = vunpack.c.l.b16 %v309
      %v690 = vunpack.c.l.b16 %v310
      %v691 = vunpack.c.l.b16 %v311
      %v692 = vunpack.c.l.b16 %v312
      %v693 = vunpack.c.l.b16 %v313
      %v694 = vunpack.c.l.b16 %v314
      %v695 = vunpack.c.l.b16 %v315
      %v696 = vunpack.c.l.b16 %v316
      %v697 = vunpack.c.l.b16 %v317
      %v698 = vunpack.c.l.b16 %v318
      %v699 = vunpack.c.l.b16 %v319
      %v700 = vunpack.c.l.b16 %v320
      %v701 = vunpack.c.l.b16 %v321
      %v702 = vunpack.c.l.b16 %v322
      %v703 = vunpack.c.l.b16 %v323
      %v704 = vunpack.c.l.b16 %v324
      %v705 = vunpack.c.l.b16 %v325
      %v706 = vunpack.c.l.b16 %v326
      %v707 = vunpack.c.l.b16 %v327
      %v708 = vunpack.c.l.b16 %v328
      %v709 = vunpack.c.l.b16 %v329
      %v710 = vunpack.c.l.b16 %v330
      %v711 = vunpack.c.l.b16 %v331
      %v712 = vunpack.c.l.b16 %v332
      %v713 = vunpack.c.l.b16 %v333
      %v714 = vunpack.c.l.b16 %v334
      %v715 = vunpack.c.l.b16 %v335
      %v716 = vunpack.c.l.b16 %v336
      %v717 = vunpack.c.l.b16 %v337
      %v718 = vunpack.c.l.b16 %v338
      %v719 = vunpack.c.l.b16 %v339
      %v720 = vunpack.c.l.b16 %v340
      %v721 = vunpack.c.l.b16 %v341
      %v722 = vunpack.c.l.b16 %v342
      %v723 = vunpack.c.l.b16 %v343
      %v724 = vunpack.c.l.b16 %v344
      %v725 = vunpack.c.l.b16 %v345
      %v726 = vunpack.c.l.b16 %v346
      %v727 = vunpack.c.l.b16 %v347
      %v728 = vunpack.c.l.b16 %v348
      %v729 = vunpack.c.l.b16 %v349
      %v730 = vunpack.c.l.b16 %v350
      %v731 = vunpack.c.l.b16 %v351
      %v732 = vunpack.c.l.b16 %v352
      %v733 = vunpack.c.l.b16 %v353
      %v734 = vunpack.c.l.b16 %v354
      %v735 = vunpack.c.l.b16 %v355
      %v736 = vunpack.c.l.b16 %v356
      %v737 = vunpack.c.l.b16 %v357
      %v738 = vunpack.c.l.b16 %v358
      %v739 = vunpack.c.l.b16 %v359
      %v740 = vunpack.c.l.b16 %v360
      %v741 = vunpack.c.l.b16 %v361
      %v742 = vunpack.c.l.b16 %v362
      %v743 = vunpack.c.l.b16 %v363
      %v744 = vunpack.c.l.b16 %v364
      %v745 = vunpack.c.l.b16 %v365
      %v746 = vunpack.c.l.b16 %v366
      %v747 = vunpack.c.l.b16 %v367
      %v748 = vunpack.c.l.b16 %v368
      %v749 = vunpack.c.l.b16 %v369
      %v750 = vunpack.c.l.b16 %v370
      %v751 = vunpack.c.l.b16 %v371
      %v752 = vunpack.c.l.b16 %v372
      %v753 = vunpack.c.l.b16 %v373
      %v754 = vunpack.c.l.b16 %v374
      %v755 = vunpack.c.l.b16 %v375
      %v756 = vunpack.c.l.b16 %v376
      %v757 = vunpack.c.l.b16 %v377
      %v758 = vpack.c.b16 %v615, %v614
      %v759 = vpack.c.b16 %v617, %v616
      %v760 = vpack.c.b16 %v619, %v618
      %v761 = vpack.c.b16 %v621, %v620
      %v762 = vpack.c.b16 %v623, %v622
      %v763 = vpack.c.b16 %v625, %v624
      %v764 = vpack.c.b16 %v627, %v626
      %v765 = vpack.c.b16 %v629, %v628
      %v766 = vpack.c.b16 %v631, %v630
      %v767 = vpack.c.b16 %v633, %v632
      %v768 = vpack.c.b16 %v635, %v634
      %v769 = vpack.c.b16 %v637, %v636
      %v770 = vpack.c.b16 %v639, %v638
      %v771 = vpack.c.b16 %v641, %v640
      %v772 = vpack.c.b16 %v643, %v642
      %v773 = vpack.c.b16 %v645, %v644
      %v774 = vpack.c.b16 %v647, %v646
      %v775 = vpack.c.b16 %v649, %v648
      %v776 = vpack.c.b16 %v651, %v650
      %v777 = vpack.c.b16 %v653, %v652
      %v778 = vpack.c.b16 %v655, %v654
      %v779 = vpack.c.b16 %v657, %v656
      %v780 = vpack.c.b16 %v659, %v658
      %v781 = vpack.c.b16 %v661, %v660
      %v782 = vpack.c.b16 %v663, %v662
      %v783 = vpack.c.b16 %v665, %v664
      %v784 = vpack.c.b16 %v667, %v666
      %v785 = vpack.c.b16 %v669, %v668
      %v786 = vpack.c.b16 %v671, %v670
      %v787 = vpack.c.b16 %v673, %v672
      %v788 = vpack.c.b16 %v675, %v674
      %v789 = vpack.c.b16 %v677, %v676
      %v790 = vpack.c.b16 %v679, %v678
      %v791 = vpack.c.b16 %v681, %v680
      %v792 = vpack.c.b16 %v683, %v682
      %v793 = vpack.c.b16 %v685, %v684
      %v794 = vpack.c.b16 %v687, %v686
      %v795 = vpack.c.b16 %v689, %v688
      %v796 = vpack.c.b16 %v691, %v690
      %v797 = vpack.c.b16 %v693, %v692
      %v798 = vpack.c.b16 %v695, %v694
      %v799 = vpack.c.b16 %v697, %v696
      %v800 = vpack.c.b16 %v699, %v698
      %v801 = vpack.c.b16 %v701, %v700
      %v802 = vpack.c.b16 %v703, %v702
      %v803 = vpack.c.b16 %v705, %v704
      %v804 = vpack.c.b16 %v707, %v706
      %v805 = vpack.c.b16 %v709, %v708
      %v806 = vpack.c.b16 %v711, %v710
      %v807 = vpack.c.b16 %v713, %v712
      %v808 = vpack.c.b16 %v715, %v714
      %v809 = vpack.c.b16 %v717, %v716
      %v810 = vpack.c.b16 %v719, %v718
      %v811 = vpack.c.b16 %v721, %v720
      %v812 = vpack.c.b16 %v723, %v722
      %v813 = vpack.c.b16 %v725, %v724
      %v814 = vpack.c.b16 %v727, %v726
      %v815 = vpack.c.b16 %v729, %v728
      %v816 = vpack.c.b16 %v731, %v730
      %v817 = vpack.c.b16 %v733, %v732
      %v818 = vpack.c.b16 %v735, %v734
      %v819 = vpack.c.b16 %v737, %v736
      %v820 = vpack.c.b16 %v739, %v738
      %v821 = vpack.c.b16 %v741, %v740
      %v822 = vpack.c.b16 %v743, %v742
      %v823 = vpack.c.b16 %v745, %v744
      %v824 = vpack.c.b16 %v747, %v746
      %v825 = vpack.c.b16 %v749, %v748
      %v826 = vpack.c.b16 %v751, %v750
      %v827 = vpack.c.b16 %v753, %v752
      %v828 = vpack.c.b16 %v755, %v754
      %v829 = vpack.c.b16 %v757, %v756
      %902 = vmatprep.subr.bf16.mxu0 0
      %903 = vmatpush1.bf16.msra.mxu0 %v758
      %904 = vmatprep.subr.bf16.mxu0 0
      %905 = vmatpush1.bf16.msra.mxu0 %v759
      %906 = vmatprep.subr.bf16.mxu0 0
      %907 = vmatpush1.bf16.msra.mxu0 %v760
      %908 = vmatprep.subr.bf16.mxu0 0
      %909 = vmatpush1.bf16.msra.mxu0 %v761
      %910 = vmatprep.subr.bf16.mxu0 0
      %911 = vmatpush1.bf16.msra.mxu0 %v762
      %912 = vmatprep.subr.bf16.mxu0 0
      %913 = vmatpush1.bf16.msra.mxu0 %v763
      %914 = vmatprep.subr.bf16.mxu0 0
      %915 = vmatpush1.bf16.msra.mxu0 %v764
      %916 = vmatprep.subr.bf16.mxu0 0
      %917 = vmatpush1.bf16.msra.mxu0 %v765
      %918 = vmatprep.subr.bf16.mxu0 0
      %919 = vmatpush1.bf16.msra.mxu0 %v766
      %920 = vmatprep.subr.bf16.mxu0 0
      %921 = vmatpush1.bf16.msra.mxu0 %v767
      %922 = vmatprep.subr.bf16.mxu0 0
      %923 = vmatpush1.bf16.msra.mxu0 %v768
      %924 = vmatprep.subr.bf16.mxu0 0
      %925 = vmatpush1.bf16.msra.mxu0 %v769
      %926 = vmatprep.subr.bf16.mxu0 0
      %927 = vmatpush1.bf16.msra.mxu0 %v770
      %928 = vmatprep.subr.bf16.mxu0 0
      %929 = vmatpush1.bf16.msra.mxu0 %v771
      %930 = vmatprep.subr.bf16.mxu0 0
      %931 = vmatpush1.bf16.msra.mxu0 %v772
      %932 = vmatprep.subr.bf16.mxu0 0
      %933 = vmatpush1.bf16.msra.mxu0 %v773
      %934 = vmatprep.mubr.bf16.mxu0 %v435
      %935 = vmatmul.mubr.bf16.gmra.mrb[0].mxu0 %v434
      %v936 = vpop.f32.mrb[0].mxu0
      %v937 = vadd.f32 0.0, %v936
      %v938 = vpop.f32.mrb[0].mxu0
      %v939 = vpop.f32.mrb[0].mxu0
      %v940 = vadd.f32 0.0, %v939
      %v941 = vpop.f32.mrb[0].mxu0
      %942 = vmatprep.mubr.bf16.mxu0 %v444
      %943 = vmatmul.mubr.bf16.gmra.mrb[0].mxu0 %v443
      %v944 = vpop.f32.mrb[0].mxu0
      %v945 = vadd.f32 0.0, %v944
      %v946 = vpop.f32.mrb[0].mxu0
      %v947 = vpop.f32.mrb[0].mxu0
      %v948 = vadd.f32 0.0, %v947
      %v949 = vpop.f32.mrb[0].mxu0
      %950 = vdwg.mxu0
      %951 = vmatprep.subr.bf16.mxu0 0
      %952 = vmatpush1.bf16.msra.mxu0 %v774
      %953 = vmatprep.subr.bf16.mxu0 0
      %954 = vmatpush1.bf16.msra.mxu0 %v775
      %955 = vmatprep.subr.bf16.mxu0 0
      %956 = vmatpush1.bf16.msra.mxu0 %v776
      %957 = vmatprep.subr.bf16.mxu0 0
      %958 = vmatpush1.bf16.msra.mxu0 %v777
      %959 = vmatprep.subr.bf16.mxu0 0
      %960 = vmatpush1.bf16.msra.mxu0 %v778
      %961 = vmatprep.subr.bf16.mxu0 0
      %962 = vmatpush1.bf16.msra.mxu0 %v779
      %963 = vmatprep.subr.bf16.mxu0 0
      %964 = vmatpush1.bf16.msra.mxu0 %v780
      %965 = vmatprep.subr.bf16.mxu0 0
      %966 = vmatpush1.bf16.msra.mxu0 %v781
      %967 = vmatprep.subr.bf16.mxu0 0
      %968 = vmatpush1.bf16.msra.mxu0 %v782
      %969 = vmatprep.subr.bf16.mxu0 0
      %970 = vmatpush1.bf16.msra.mxu0 %v783
      %971 = vmatprep.subr.bf16.mxu0 0
      %972 = vmatpush1.bf16.msra.mxu0 %v784
      %973 = vmatprep.subr.bf16.mxu0 0
      %974 = vmatpush1.bf16.msra.mxu0 %v785
      %975 = vmatprep.subr.bf16.mxu0 0
      %976 = vmatpush1.bf16.msra.mxu0 %v786
      %977 = vmatprep.subr.bf16.mxu0 0
      %978 = vmatpush1.bf16.msra.mxu0 %v787
      %979 = vmatprep.subr.bf16.mxu0 0
      %980 = vmatpush1.bf16.msra.mxu0 %v788
      %981 = vmatprep.subr.bf16.mxu0 0
      %982 = vmatpush1.bf16.msra.mxu0 %v789
      %983 = vmatprep.mubr.bf16.mxu0 %v437
      %984 = vmatmul.mubr.bf16.gmra.mrb[0].mxu0 %v436
      %v985 = vpop.f32.mrb[0].mxu0
      %v986 = vadd.f32 %v937, %v985
      %v987 = vpop.f32.mrb[0].mxu0
      %v988 = vpop.f32.mrb[0].mxu0
      %v989 = vadd.f32 %v940, %v988
      %v990 = vpop.f32.mrb[0].mxu0
      %991 = vmatprep.mubr.bf16.mxu0 %v446
      %992 = vmatmul.mubr.bf16.gmra.mrb[0].mxu0 %v445
      %v993 = vpop.f32.mrb[0].mxu0
      %v994 = vadd.f32 %v945, %v993
      %v995 = vpop.f32.mrb[0].mxu0
      %v996 = vpop.f32.mrb[0].mxu0
      %v997 = vadd.f32 %v948, %v996
      %v998 = vpop.f32.mrb[0].mxu0
      %999 = vdwg.mxu0
      %1000 = vmatprep.subr.bf16.mxu0 0
      %1001 = vmatpush1.bf16.msra.mxu0 %v790
      %1002 = vmatprep.subr.bf16.mxu0 0
      %1003 = vmatpush1.bf16.msra.mxu0 %v791
      %1004 = vmatprep.subr.bf16.mxu0 0
      %1005 = vmatpush1.bf16.msra.mxu0 %v792
      %1006 = vmatprep.subr.bf16.mxu0 0
      %1007 = vmatpush1.bf16.msra.mxu0 %v793
      %1008 = vmatprep.subr.bf16.mxu0 0
      %1009 = vmatpush1.bf16.msra.mxu0 %v794
      %1010 = vmatprep.subr.bf16.mxu0 0
      %1011 = vmatpush1.bf16.msra.mxu0 %v795
      %1012 = vmatprep.subr.bf16.mxu0 0
      %1013 = vmatpush1.bf16.msra.mxu0 %v796
      %1014 = vmatprep.subr.bf16.mxu0 0
      %1015 = vmatpush1.bf16.msra.mxu0 %v797
      %1016 = vmatprep.subr.bf16.mxu0 0
      %1017 = vmatpush1.bf16.msra.mxu0 %v798
      %1018 = vmatprep.subr.bf16.mxu0 0
      %1019 = vmatpush1.bf16.msra.mxu0 %v799
      %1020 = vmatprep.subr.bf16.mxu0 0
      %1021 = vmatpush1.bf16.msra.mxu0 %v800
      %1022 = vmatprep.subr.bf16.mxu0 0
      %1023 = vmatpush1.bf16.msra.mxu0 %v801
      %1024 = vmatprep.subr.bf16.mxu0 0
      %1025 = vmatpush1.bf16.msra.mxu0 %v802
      %1026 = vmatprep.subr.bf16.mxu0 0
      %1027 = vmatpush1.bf16.msra.mxu0 %v803
      %1028 = vmatprep.subr.bf16.mxu0 0
      %1029 = vmatpush1.bf16.msra.mxu0 %v804
      %1030 = vmatprep.subr.bf16.mxu0 0
      %1031 = vmatpush1.bf16.msra.mxu0 %v805
      %1032 = vmatprep.mubr.bf16.mxu0 %v439
      %1033 = vmatmul.mubr.bf16.gmra.mrb[0].mxu0 %v438
      %v1034 = vpop.f32.mrb[0].mxu0
      %v1035 = vadd.f32 %v986, %v1034
      %v1036 = vpop.f32.mrb[0].mxu0
      %v1037 = vpop.f32.mrb[0].mxu0
      %v1038 = vadd.f32 %v989, %v1037
      %v1039 = vpop.f32.mrb[0].mxu0
      %1040 = vmatprep.mubr.bf16.mxu0 %v448
      %1041 = vmatmul.mubr.bf16.gmra.mrb[0].mxu0 %v447
      %v1042 = vpop.f32.mrb[0].mxu0
      %v1043 = vadd.f32 %v994, %v1042
      %v1044 = vpop.f32.mrb[0].mxu0
      %v1045 = vpop.f32.mrb[0].mxu0
      %v1046 = vadd.f32 %v997, %v1045
      %v1047 = vpop.f32.mrb[0].mxu0
      %1048 = vdwg.mxu0
      %1049 = vmatprep.subr.bf16.mxu0 0
      %1050 = vmatpush1.bf16.msra.mxu0 %v806
      %1051 = vmatprep.subr.bf16.mxu0 0
      %1052 = vmatpush1.bf16.msra.mxu0 %v807
      %1053 = vmatprep.subr.bf16.mxu0 0
      %1054 = vmatpush1.bf16.msra.mxu0 %v808
      %1055 = vmatprep.subr.bf16.mxu0 0
      %1056 = vmatpush1.bf16.msra.mxu0 %v809
      %1057 = vmatprep.subr.bf16.mxu0 0
      %1058 = vmatpush1.bf16.msra.mxu0 %v810
      %1059 = vmatprep.subr.bf16.mxu0 0
      %1060 = vmatpush1.bf16.msra.mxu0 %v811
      %1061 = vmatprep.subr.bf16.mxu0 0
      %1062 = vmatpush1.bf16.msra.mxu0 %v812
      %1063 = vmatprep.subr.bf16.mxu0 0
      %1064 = vmatpush1.bf16.msra.mxu0 %v813
      %1065 = vmatprep.subr.bf16.mxu0 0
      %1066 = vmatpush1.bf16.msra.mxu0 %v814
      %1067 = vmatprep.subr.bf16.mxu0 0
      %1068 = vmatpush1.bf16.msra.mxu0 %v815
      %1069 = vmatprep.subr.bf16.mxu0 0
      %1070 = vmatpush1.bf16.msra.mxu0 %v816
      %1071 = vmatprep.subr.bf16.mxu0 0
      %1072 = vmatpush1.bf16.msra.mxu0 %v817
      %1073 = vmatprep.subr.bf16.mxu0 0
      %1074 = vmatpush1.bf16.msra.mxu0 %v818
      %1075 = vmatprep.subr.bf16.mxu0 0
      %1076 = vmatpush1.bf16.msra.mxu0 %v819
      %1077 = vmatprep.subr.bf16.mxu0 0
      %1078 = vmatpush1.bf16.msra.mxu0 %v820
      %1079 = vmatprep.subr.bf16.mxu0 0
      %1080 = vmatpush1.bf16.msra.mxu0 %v821
      %1081 = vmatprep.mubr.bf16.mxu0 %v441
      %1082 = vmatmul.mubr.bf16.gmra.mrb[0].mxu0 %v440
      %v1083 = vpop.f32.mrb[0].mxu0
      %v1084 = vadd.f32 %v1035, %v1083
      %v1085 = vpop.f32.mrb[0].mxu0
      %v1086 = vpop.f32.mrb[0].mxu0
      %v1087 = vadd.f32 %v1038, %v1086
      %v1088 = vpop.f32.mrb[0].mxu0
      %1089 = vmatprep.mubr.bf16.mxu0 %v450
      %1090 = vmatmul.mubr.bf16.gmra.mrb[0].mxu0 %v449
      %v1091 = vpop.f32.mrb[0].mxu0
      %v1092 = vadd.f32 %v1043, %v1091
      %v1093 = vpop.f32.mrb[0].mxu0
      %v1094 = vpop.f32.mrb[0].mxu0
      %v1095 = vadd.f32 %v1046, %v1094
      %v1096 = vpop.f32.mrb[0].mxu0
      %1097 = vdwg.mxu0
      %1098 = vmatprep.subr.bf16.mxu0 0
      %1099 = vmatpush1.bf16.msra.mxu0 %v822
      %1100 = vmatprep.subr.bf16.mxu0 0
      %1101 = vmatpush1.bf16.msra.mxu0 %v823
      %1102 = vmatprep.subr.bf16.mxu0 0
      %1103 = vmatpush1.bf16.msra.mxu0 %v824
      %1104 = vmatprep.subr.bf16.mxu0 0
      %1105 = vmatpush1.bf16.msra.mxu0 %v825
      %1106 = vmatprep.subr.bf16.mxu0 0
      %1107 = vmatpush1.bf16.msra.mxu0 %v826
      %1108 = vmatprep.subr.bf16.mxu0 0
      %1109 = vmatpush1.bf16.msra.mxu0 %v827
      %1110 = vmatprep.subr.bf16.mxu0 0
      %1111 = vmatpush1.bf16.msra.mxu0 %v828
      %1112 = vmatprep.subr.bf16.mxu0 0
      %1113 = vmatpush1.bf16.msra.mxu0 %v829
      %1114 = vmatprep.subr.bf16.mxu0 0
      %1115 = vmatpush1.bf16.msra.mxu0 0
      %1116 = vmatprep.subr.bf16.mxu0 0
      %1117 = vmatpush1.bf16.msra.mxu0 0
      %1118 = vmatprep.subr.bf16.mxu0 0
      %1119 = vmatpush1.bf16.msra.mxu0 0
      %1120 = vmatprep.subr.bf16.mxu0 0
      %1121 = vmatpush1.bf16.msra.mxu0 0
      %1122 = vmatprep.subr.bf16.mxu0 0
      %1123 = vmatpush1.bf16.msra.mxu0 0
      %1124 = vmatprep.subr.bf16.mxu0 0
      %1125 = vmatpush1.bf16.msra.mxu0 0
      %1126 = vmatprep.subr.bf16.mxu0 0
      %1127 = vmatpush1.bf16.msra.mxu0 0
      %1128 = vmatprep.subr.bf16.mxu0 0
      %1129 = vmatpush1.bf16.msra.mxu0 0
      %1130 = vmatprep.mubr.bf16.mxu0 0
      %1131 = vmatmul.mubr.bf16.gmra.mrb[0].mxu0 %v442
      %v1132 = vpop.f32.mrb[0].mxu0
      %v1133 = vadd.f32 %v1084, %v1132
      %v1134 = vpop.f32.mrb[0].mxu0
      %v1135 = vpop.f32.mrb[0].mxu0
      %v1136 = vadd.f32 %v1087, %v1135
      %v1137 = vpop.f32.mrb[0].mxu0
      %1138 = vmatprep.mubr.bf16.mxu0 0
      %1139 = vmatmul.mubr.bf16.gmra.mrb[0].mxu0 %v451
      %v1140 = vpop.f32.mrb[0].mxu0
      %v1141 = vadd.f32 %v1092, %v1140
      %v1142 = vpop.f32.mrb[0].mxu0
      %v1143 = vpop.f32.mrb[0].mxu0
      %v1144 = vadd.f32 %v1095, %v1143
      %v1145 = vpop.f32.mrb[0].mxu0
      %1146 = vdwg.mxu0
      %p1147 = scmp.eq.s32.totalorder %s19, 0
      // Predicated region
      $region37: #{relation_network_forward.2} parent=35 // pred_check
        %p1148 = pneg %p1147
      $region38: #{relation_network_forward.2} parent=35 // pred_check_branch
        %1150 = sbr.rel (%p1148) target = $region40
      $region39: #{relation_network_forward.2} parent=35 // pred_region
        %p1151 = scmp.eq.s32.totalorder %s20, 0
        // Predicated region
        $region41: #{relation_network_forward.2} parent=39 // pred_check
          %p1152 = pneg %p1151
        $region42: #{relation_network_forward.2} parent=39 // pred_check_branch
          %1154 = sbr.rel (%p1152) target = $region44
        $region43: #{relation_network_forward.2} parent=39 // pred_region
          %1155 = vst [vmem:[#allocation2] sm:$0x1] 0.0
          %1156 = vst [vmem:[#allocation3] sm:$0x1] 0.0
        $region44: #{relation_network_forward.2} parent=39 // pred_fallthru
          _
        %v1157 = vld [vmem:[#allocation2] sm:$0x1]
        %v1158 = vadd.f32 %v1133, %v1136
        %v1159 = vadd.f32 %v1158, %v1141
        %v1160 = vadd.f32 %v1159, %v1144
        %v1161 = vrot.slane %v1160, 4
        %v1162 = vadd.f32 %v1160, %v1161
        %v1163 = vrot.slane %v1162, 2
        %v1164 = vadd.f32 %v1162, %v1163
        %v1165 = vrot.slane %v1164, 1
        %v1166 = vadd.f32 %v1164, %v1165
        %v1167 = vadd.f32 %v1157, %v1166
        %1168 = vst [vmem:[#allocation2] sm:$0x1] %v1167
        %v1169 = vld [vmem:[#allocation3] sm:$0x1]
        %v1170 = vmul.f32 %v1133, %v1133
        %v1171 = vmul.f32 %v1136, %v1136
        %v1172 = vmul.f32 %v1141, %v1141
        %v1173 = vmul.f32 %v1144, %v1144
        %v1174 = vadd.f32 %v1170, %v1171
        %v1175 = vadd.f32 %v1174, %v1172
        %v1176 = vadd.f32 %v1175, %v1173
        %v1177 = vrot.slane %v1176, 4
        %v1178 = vadd.f32 %v1176, %v1177
        %v1179 = vrot.slane %v1178, 2
        %v1180 = vadd.f32 %v1178, %v1179
        %v1181 = vrot.slane %v1180, 1
        %v1182 = vadd.f32 %v1180, %v1181
        %v1183 = vadd.f32 %v1169, %v1182
        %1184 = vst [vmem:[#allocation3] sm:$0x1] %v1183
        // Predicated region
        $region45: #{relation_network_forward.2} parent=39 // pred_check
          %p1185 = pneg %p1151
        $region46: #{relation_network_forward.2} parent=39 // pred_check_branch
          %1187 = sbr.rel (%p1185) target = $region48
        $region47: #{relation_network_forward.2} parent=39 // pred_region
          %v1188 = vld [vmem:[#allocation2] sm:$0x1]
          %v1189 = vrcp.pop 32.0
          %v1190 = vmul.f32 %v1188, %v1189
          %v1191 = vld [vmem:[#allocation3] sm:$0x1]
          %v1192 = vmul.f32 %v1191, %v1189
          %v1193 = vmul.f32 %v1190, %v1190
          %v1194 = vsub.f32 %v1192, %v1193
          %v1195 = vadd.f32 %v1194, 1e-05
          %v1196 = vrsqrt.pop %v1195
          %v1197 = vld [vmem:[%s2] sm:$0x1]
          %v1198 = vmul.f32 %v1197, %v1196
          %1199 = vst [vmem:[#allocation4] sm:$0x1] %v1198
          %v1200 = vld [vmem:[%s3] sm:$0x1]
          %v1201 = vmul.f32 %v1190, %v1198
          %v1202 = vsub.f32 %v1200, %v1201
          %1203 = vst [vmem:[#allocation5] sm:$0x1] %v1202
        $region48: #{relation_network_forward.2} parent=39 // pred_fallthru
          _
        %1204 = vst [vmem:[%s212] sm:$0xf] 0
      $region40: #{relation_network_forward.2} parent=35 // pred_fallthru
        _
      %p1205 = scmp.eq.s32.totalorder %s19, 1
      // Predicated region
      $region49: #{relation_network_forward.2} parent=35 // pred_check
        %p1206 = pneg %p1205
      $region50: #{relation_network_forward.2} parent=35 // pred_check_branch
        %1208 = sbr.rel (%p1206) target = $region52
      $region51: #{relation_network_forward.2} parent=35 // pred_region
        %v1209 = vld [vmem:[#allocation4] sm:$0x1]
        %v1211 = vlaneseq
        %v1212 = vshrl.u32 %v1211, 7
        %v1213 = vsub.s32 0, %v1212
        %v1214 = vrot.slane %v1209, %v1213
        %v1216 = vmul.f32 %v1133, %v1214
        %v1217 = vmul.f32 %v1136, %v1214
        %v1218 = vmul.f32 %v1141, %v1214
        %v1219 = vmul.f32 %v1144, %v1214
        %v1220 = vld [vmem:[#allocation5] sm:$0x1]
        %v1222 = vlaneseq
        %v1223 = vshrl.u32 %v1222, 7
        %v1224 = vsub.s32 0, %v1223
        %v1225 = vrot.slane %v1220, %v1224
        %v1227 = vadd.f32 %v1216, %v1225
        %v1228 = vadd.f32 %v1217, %v1225
        %v1229 = vadd.f32 %v1218, %v1225
        %v1230 = vadd.f32 %v1219, %v1225
        %v1231 = vmax.f32 %v1227, 0.0
        %v1232 = vmax.f32 %v1228, 0.0
        %v1233 = vmax.f32 %v1229, 0.0
        %v1234 = vmax.f32 %v1230, 0.0
        %v1235 = vmax.f32 %v1231, %v1232
        %v1236 = vmax.f32 %v1233, %v1234
        %v1237 = vmax.f32 %v1235, %v1236
        %v1238 = vpack.c.bf16 %v1237, %v1237
        %1239 = vst [vmem:[%s212] sm:$0xf] %v1238
      $region52: #{relation_network_forward.2} parent=35 // pred_fallthru
        _
      %p1240 = scmp.lt.s32.totalorder %s20, 0
      %s1241 = scalar_select %p1240, %s20, 0
      %s1242 = smul.addr %s1241, 4
      %s1243 = scalar_lea.vmem %s4, %s1242
      // Predicated region
      $region53: #{relation_network_forward.2} parent=35 // pred_check
        %p1244 = pneg %p134
      $region54: #{relation_network_forward.2} parent=35 // pred_check_branch
        %1246 = sbr.rel (%p1244) target = $region56
      $region55: #{relation_network_forward.2} parent=35 // pred_region
        _
      $region56: #{relation_network_forward.2} parent=35 // pred_fallthru
        _
      // Predicated region
      $region57: #{relation_network_forward.2} parent=35 // pred_check
        %p1247 = pneg %p134
      $region58: #{relation_network_forward.2} parent=35 // pred_check_branch
        %1249 = sbr.rel (%p1247) target = $region60
      $region59: #{relation_network_forward.2} parent=35 // pred_region
        %p1250 = scmp.lt.s32.totalorder %s20, 0
        %s1251 = scalar_select %p1250, %s20, 0
        %s1252 = smul.addr %s1251, 4
        %s1253 = scalar_lea.vmem %s4, %s1252
      $region60: #{relation_network_forward.2} parent=35 // pred_fallthru
        _
    $region36: #{relation_network_forward.2} parent=5 // pred_fallthru
      _
    %p1254 = scmp.le.s32.totalorder 2, %s10
    // Predicated region
    $region61: #{relation_network_forward.2} parent=5 // pred_check
      %p1255 = pneg %p1254
    $region62: #{relation_network_forward.2} parent=5 // pred_check_branch
      %1257 = sbr.rel (%p1255) target = $region64
    $region63: #{relation_network_forward.2} parent=5 // pred_region
      %s1258 = ssub.s32 %s10, 2
    $region64: #{relation_network_forward.2} parent=5 // pred_fallthru
      _
  $region6: #{relation_network_forward.2} parent=0 // loop_footer
    %s14 = sadd.s32 1, %s10
  $region7: #{relation_network_forward.2} parent=0 // loop_footer_branch
    %9 = sbr.rel target = $region3
  $region8: #{relation_network_forward.2} parent=0 // loop_exit
    _

// kernel: relation_network_forward.3
$region0: #{relation_network_forward.3}
  #allocation0 [shape = 'u32[]', space=smem, size = 0x4, offset = 0x4, fixed_abs, tag = 'smem constant byte address 0x4 - core index']
  #allocation1 [shape = 'u32[144,128]{1,0:T(1,128)}', space=vmem, size = 0x12000, scoped, tag = 'internal scratch']
  #allocation2 [shape = 'f32[1,1]{1,0:T(1,128)S(1)}', space=vmem, size = 0x200, scoped, tag = 'scoped memory for relation_network_forward.3']
  %s0 = inlined_call_operand.vmem [shape: bf16[8,1152], index: 0, kind: input, shape index: {}]
  %s1 = inlined_call_operand.vmem [shape: bf16[1152,128], index: 1, kind: input, shape index: {}]
  %s2 = inlined_call_operand.vmem [shape: f32[1,128], index: 2, kind: input, shape index: {}]
  %s3 = inlined_call_operand.vmem [shape: f32[1,128], index: 3, kind: input, shape index: {}]
  %s4 = inlined_call_operand.vmem [shape: f32[128,128], index: 4, kind: input, shape index: {}]
  %s5 = inlined_call_operand.vmem [shape: f32[1,128], index: 5, kind: input, shape index: {}]
  %s6 = inlined_call_operand.vmem [shape: f32[1,128], index: 6, kind: input, shape index: {}]
  %s7 = inlined_call_operand.<no memory space> [shape: f32[1,1], index: 7, kind: input, shape index: {}]
  %s8 = inlined_call_operand.vmem [shape: f32[2,1], index: 8, kind: output, shape index: {}]
  %s9 = sld [smem:[#allocation0]]
  $region42: #{relation_network_forward.3} parent=0
    _
  %s11 = ssub.s32 1, %s9
  %s12 = scalar_select 0, %s11, %s9
  %v13 = vstv %s7
  %14 = vst [vmem:[#allocation2] sm:$0x1] %v13
  // Predicated region
  $region2: #{relation_network_forward.3} parent=0 // pred_check
    _
  $region3: #{relation_network_forward.3} parent=0 // pred_check_branch
    %16 = sbr.rel (0) target = $region5
  $region4: #{relation_network_forward.3} parent=0 // pred_region
    _
  $region5: #{relation_network_forward.3} parent=0 // pred_fallthru
    _
  // Predicated region
  $region6: #{relation_network_forward.3} parent=0 // pred_check
    _
  $region7: #{relation_network_forward.3} parent=0 // pred_check_branch
    %18 = sbr.rel (0) target = $region9
  $region8: #{relation_network_forward.3} parent=0 // pred_region
    _
  $region9: #{relation_network_forward.3} parent=0 // pred_fallthru
    _
  // Predicated region
  $region10: #{relation_network_forward.3} parent=0 // pred_check
    _
  $region11: #{relation_network_forward.3} parent=0 // pred_check_branch
    %20 = sbr.rel (0) target = $region13
  $region12: #{relation_network_forward.3} parent=0 // pred_region
    _
  $region13: #{relation_network_forward.3} parent=0 // pred_fallthru
    _
  // Predicated region
  $region14: #{relation_network_forward.3} parent=0 // pred_check
    _
  $region15: #{relation_network_forward.3} parent=0 // pred_check_branch
    %22 = sbr.rel (0) target = $region17
  $region16: #{relation_network_forward.3} parent=0 // pred_region
    _
  $region17: #{relation_network_forward.3} parent=0 // pred_fallthru
    _
  // Predicated region
  $region18: #{relation_network_forward.3} parent=0 // pred_check
    _
  $region19: #{relation_network_forward.3} parent=0 // pred_check_branch
    %24 = sbr.rel (0) target = $region21
  $region20: #{relation_network_forward.3} parent=0 // pred_region
    _
  $region21: #{relation_network_forward.3} parent=0 // pred_fallthru
    _
  // Predicated region
  $region22: #{relation_network_forward.3} parent=0 // pred_check
    _
  $region23: #{relation_network_forward.3} parent=0 // pred_check_branch
    %26 = sbr.rel (0) target = $region25
  $region24: #{relation_network_forward.3} parent=0 // pred_region
    _
  $region25: #{relation_network_forward.3} parent=0 // pred_fallthru
    _
  // Predicated region
  $region26: #{relation_network_forward.3} parent=0 // pred_check
    _
  $region27: #{relation_network_forward.3} parent=0 // pred_check_branch
    %28 = sbr.rel (0) target = $region29
  $region28: #{relation_network_forward.3} parent=0 // pred_region
    _
  $region29: #{relation_network_forward.3} parent=0 // pred_fallthru
    _
  // Predicated region
  $region30: #{relation_network_forward.3} parent=0 // pred_check
    _
  $region31: #{relation_network_forward.3} parent=0 // pred_check_branch
    %30 = sbr.rel (0) target = $region33
  $region32: #{relation_network_forward.3} parent=0 // pred_region
    _
  $region33: #{relation_network_forward.3} parent=0 // pred_fallthru
    _
  %v32 = vld [vmem:[%s0] sm:$0xff]
  %v33 = vld [vmem:[%s0 + $0x8] sm:$0xff]
  %v34 = vld [vmem:[%s0 + $0x10] sm:$0xff]
  %v35 = vld [vmem:[%s0 + $0x18] sm:$0xff]
  %v36 = vld [vmem:[%s0 + $0x20] sm:$0xf]
  %v37 = vld [vmem:[%s1] sm:$0xf]
  %v38 = vld [vmem:[%s1 + $0x4] sm:$0xf]
  %v39 = vld [vmem:[%s1 + $0x8] sm:$0xf]
  %v40 = vld [vmem:[%s1 + $0xc] sm:$0xf]
  %v41 = vld [vmem:[%s1 + $0x10] sm:$0xf]
  %v42 = vld [vmem:[%s1 + $0x14] sm:$0xf]
  %v43 = vld [vmem:[%s1 + $0x18] sm:$0xf]
  %v44 = vld [vmem:[%s1 + $0x1c] sm:$0xf]
  %v45 = vld [vmem:[%s1 + $0x20] sm:$0xf]
  %v46 = vld [vmem:[%s1 + $0x24] sm:$0xf]
  %v47 = vld [vmem:[%s1 + $0x28] sm:$0xf]
  %v48 = vld [vmem:[%s1 + $0x2c] sm:$0xf]
  %v49 = vld [vmem:[%s1 + $0x30] sm:$0xf]
  %v50 = vld [vmem:[%s1 + $0x34] sm:$0xf]
  %v51 = vld [vmem:[%s1 + $0x38] sm:$0xf]
  %v52 = vld [vmem:[%s1 + $0x3c] sm:$0xf]
  %v53 = vld [vmem:[%s1 + $0x40] sm:$0xf]
  %v54 = vld [vmem:[%s1 + $0x44] sm:$0xf]
  %v55 = vld [vmem:[%s1 + $0x48] sm:$0xf]
  %v56 = vld [vmem:[%s1 + $0x4c] sm:$0xf]
  %v57 = vld [vmem:[%s1 + $0x50] sm:$0xf]
  %v58 = vld [vmem:[%s1 + $0x54] sm:$0xf]
  %v59 = vld [vmem:[%s1 + $0x58] sm:$0xf]
  %v60 = vld [vmem:[%s1 + $0x5c] sm:$0xf]
  %v61 = vld [vmem:[%s1 + $0x60] sm:$0xf]
  %v62 = vld [vmem:[%s1 + $0x64] sm:$0xf]
  %v63 = vld [vmem:[%s1 + $0x68] sm:$0xf]
  %v64 = vld [vmem:[%s1 + $0x6c] sm:$0xf]
  %v65 = vld [vmem:[%s1 + $0x70] sm:$0xf]
  %v66 = vld [vmem:[%s1 + $0x74] sm:$0xf]
  %v67 = vld [vmem:[%s1 + $0x78] sm:$0xf]
  %v68 = vld [vmem:[%s1 + $0x7c] sm:$0xf]
  %v69 = vld [vmem:[%s1 + $0x80] sm:$0xf]
  %v70 = vld [vmem:[%s1 + $0x84] sm:$0xf]
  %v71 = vld [vmem:[%s1 + $0x88] sm:$0xf]
  %v72 = vld [vmem:[%s1 + $0x8c] sm:$0xf]
  %v73 = vld [vmem:[%s1 + $0x90] sm:$0xf]
  %v74 = vld [vmem:[%s1 + $0x94] sm:$0xf]
  %v75 = vld [vmem:[%s1 + $0x98] sm:$0xf]
  %v76 = vld [vmem:[%s1 + $0x9c] sm:$0xf]
  %v77 = vld [vmem:[%s1 + $0xa0] sm:$0xf]
  %v78 = vld [vmem:[%s1 + $0xa4] sm:$0xf]
  %v79 = vld [vmem:[%s1 + $0xa8] sm:$0xf]
  %v80 = vld [vmem:[%s1 + $0xac] sm:$0xf]
  %v81 = vld [vmem:[%s1 + $0xb0] sm:$0xf]
  %v82 = vld [vmem:[%s1 + $0xb4] sm:$0xf]
  %v83 = vld [vmem:[%s1 + $0xb8] sm:$0xf]
  %v84 = vld [vmem:[%s1 + $0xbc] sm:$0xf]
  %v85 = vld [vmem:[%s1 + $0xc0] sm:$0xf]
  %v86 = vld [vmem:[%s1 + $0xc4] sm:$0xf]
  %v87 = vld [vmem:[%s1 + $0xc8] sm:$0xf]
  %v88 = vld [vmem:[%s1 + $0xcc] sm:$0xf]
  %v89 = vld [vmem:[%s1 + $0xd0] sm:$0xf]
  %v90 = vld [vmem:[%s1 + $0xd4] sm:$0xf]
  %v91 = vld [vmem:[%s1 + $0xd8] sm:$0xf]
  %v92 = vld [vmem:[%s1 + $0xdc] sm:$0xf]
  %v93 = vld [vmem:[%s1 + $0xe0] sm:$0xf]
  %v94 = vld [vmem:[%s1 + $0xe4] sm:$0xf]
  %v95 = vld [vmem:[%s1 + $0xe8] sm:$0xf]
  %v96 = vld [vmem:[%s1 + $0xec] sm:$0xf]
  %v97 = vld [vmem:[%s1 + $0xf0] sm:$0xf]
  %v98 = vld [vmem:[%s1 + $0xf4] sm:$0xf]
  %v99 = vld [vmem:[%s1 + $0xf8] sm:$0xf]
  %v100 = vld [vmem:[%s1 + $0xfc] sm:$0xf]
  %v101 = vld [vmem:[%s1 + $0x100] sm:$0xf]
  %v102 = vld [vmem:[%s1 + $0x104] sm:$0xf]
  %v103 = vld [vmem:[%s1 + $0x108] sm:$0xf]
  %v104 = vld [vmem:[%s1 + $0x10c] sm:$0xf]
  %v105 = vld [vmem:[%s1 + $0x110] sm:$0xf]
  %v106 = vld [vmem:[%s1 + $0x114] sm:$0xf]
  %v107 = vld [vmem:[%s1 + $0x118] sm:$0xf]
  %v108 = vld [vmem:[%s1 + $0x11c] sm:$0xf]
  %v109 = vld [vmem:[%s1 + $0x120] sm:$0xf]
  %v110 = vld [vmem:[%s1 + $0x124] sm:$0xf]
  %v111 = vld [vmem:[%s1 + $0x128] sm:$0xf]
  %v112 = vld [vmem:[%s1 + $0x12c] sm:$0xf]
  %v113 = vld [vmem:[%s1 + $0x130] sm:$0xf]
  %v114 = vld [vmem:[%s1 + $0x134] sm:$0xf]
  %v115 = vld [vmem:[%s1 + $0x138] sm:$0xf]
  %v116 = vld [vmem:[%s1 + $0x13c] sm:$0xf]
  %v117 = vld [vmem:[%s1 + $0x140] sm:$0xf]
  %v118 = vld [vmem:[%s1 + $0x144] sm:$0xf]
  %v119 = vld [vmem:[%s1 + $0x148] sm:$0xf]
  %v120 = vld [vmem:[%s1 + $0x14c] sm:$0xf]
  %v121 = vld [vmem:[%s1 + $0x150] sm:$0xf]
  %v122 = vld [vmem:[%s1 + $0x154] sm:$0xf]
  %v123 = vld [vmem:[%s1 + $0x158] sm:$0xf]
  %v124 = vld [vmem:[%s1 + $0x15c] sm:$0xf]
  %v125 = vld [vmem:[%s1 + $0x160] sm:$0xf]
  %v126 = vld [vmem:[%s1 + $0x164] sm:$0xf]
  %v127 = vld [vmem:[%s1 + $0x168] sm:$0xf]
  %v128 = vld [vmem:[%s1 + $0x16c] sm:$0xf]
  %v129 = vld [vmem:[%s1 + $0x170] sm:$0xf]
  %v130 = vld [vmem:[%s1 + $0x174] sm:$0xf]
  %v131 = vld [vmem:[%s1 + $0x178] sm:$0xf]
  %v132 = vld [vmem:[%s1 + $0x17c] sm:$0xf]
  %v133 = vld [vmem:[%s1 + $0x180] sm:$0xf]
  %v134 = vld [vmem:[%s1 + $0x184] sm:$0xf]
  %v135 = vld [vmem:[%s1 + $0x188] sm:$0xf]
  %v136 = vld [vmem:[%s1 + $0x18c] sm:$0xf]
  %v137 = vld [vmem:[%s1 + $0x190] sm:$0xf]
  %v138 = vld [vmem:[%s1 + $0x194] sm:$0xf]
  %v139 = vld [vmem:[%s1 + $0x198] sm:$0xf]
  %v140 = vld [vmem:[%s1 + $0x19c] sm:$0xf]
  %v141 = vld [vmem:[%s1 + $0x1a0] sm:$0xf]
  %v142 = vld [vmem:[%s1 + $0x1a4] sm:$0xf]
  %v143 = vld [vmem:[%s1 + $0x1a8] sm:$0xf]
  %v144 = vld [vmem:[%s1 + $0x1ac] sm:$0xf]
  %v145 = vld [vmem:[%s1 + $0x1b0] sm:$0xf]
  %v146 = vld [vmem:[%s1 + $0x1b4] sm:$0xf]
  %v147 = vld [vmem:[%s1 + $0x1b8] sm:$0xf]
  %v148 = vld [vmem:[%s1 + $0x1bc] sm:$0xf]
  %v149 = vld [vmem:[%s1 + $0x1c0] sm:$0xf]
  %v150 = vld [vmem:[%s1 + $0x1c4] sm:$0xf]
  %v151 = vld [vmem:[%s1 + $0x1c8] sm:$0xf]
  %v152 = vld [vmem:[%s1 + $0x1cc] sm:$0xf]
  %v153 = vld [vmem:[%s1 + $0x1d0] sm:$0xf]
  %v154 = vld [vmem:[%s1 + $0x1d4] sm:$0xf]
  %v155 = vld [vmem:[%s1 + $0x1d8] sm:$0xf]
  %v156 = vld [vmem:[%s1 + $0x1dc] sm:$0xf]
  %v157 = vld [vmem:[%s1 + $0x1e0] sm:$0xf]
  %v158 = vld [vmem:[%s1 + $0x1e4] sm:$0xf]
  %v159 = vld [vmem:[%s1 + $0x1e8] sm:$0xf]
  %v160 = vld [vmem:[%s1 + $0x1ec] sm:$0xf]
  %v161 = vld [vmem:[%s1 + $0x1f0] sm:$0xf]
  %v162 = vld [vmem:[%s1 + $0x1f4] sm:$0xf]
  %v163 = vld [vmem:[%s1 + $0x1f8] sm:$0xf]
  %v164 = vld [vmem:[%s1 + $0x1fc] sm:$0xf]
  %v165 = vld [vmem:[%s1 + $0x200] sm:$0xf]
  %v166 = vld [vmem:[%s1 + $0x204] sm:$0xf]
  %v167 = vld [vmem:[%s1 + $0x208] sm:$0xf]
  %v168 = vld [vmem:[%s1 + $0x20c] sm:$0xf]
  %v169 = vld [vmem:[%s1 + $0x210] sm:$0xf]
  %v170 = vld [vmem:[%s1 + $0x214] sm:$0xf]
  %v171 = vld [vmem:[%s1 + $0x218] sm:$0xf]
  %v172 = vld [vmem:[%s1 + $0x21c] sm:$0xf]
  %v173 = vld [vmem:[%s1 + $0x220] sm:$0xf]
  %v174 = vld [vmem:[%s1 + $0x224] sm:$0xf]
  %v175 = vld [vmem:[%s1 + $0x228] sm:$0xf]
  %v176 = vld [vmem:[%s1 + $0x22c] sm:$0xf]
  %v177 = vld [vmem:[%s1 + $0x230] sm:$0xf]
  %v178 = vld [vmem:[%s1 + $0x234] sm:$0xf]
  %v179 = vld [vmem:[%s1 + $0x238] sm:$0xf]
  %v180 = vld [vmem:[%s1 + $0x23c] sm:$0xf]
  %v186 = vunpack.c.l.b16 %v32
  %v187 = vunpack.c.h.b16 %v32
  %v188 = vunpack.c.l.b16 %v33
  %v189 = vunpack.c.h.b16 %v33
  %v190 = vunpack.c.l.b16 %v34
  %v191 = vunpack.c.h.b16 %v34
  %v192 = vunpack.c.l.b16 %v35
  %v193 = vunpack.c.h.b16 %v35
  %v194 = vunpack.c.l.b16 %v36
  %v195 = vpack.c.b16 %v186, %v186
  %v196 = vpack.c.b16 %v187, %v187
  %v197 = vpack.c.b16 %v188, %v188
  %v198 = vpack.c.b16 %v189, %v189
  %v199 = vpack.c.b16 %v190, %v190
  %v200 = vpack.c.b16 %v191, %v191
  %v201 = vpack.c.b16 %v192, %v192
  %v202 = vpack.c.b16 %v193, %v193
  %v203 = vpack.c.b16 %v194, %v194
  %v357 = vunpack.c.l.b16 %v37
  %v358 = vunpack.c.l.b16 %v38
  %v359 = vunpack.c.l.b16 %v39
  %v360 = vunpack.c.l.b16 %v40
  %v361 = vunpack.c.l.b16 %v41
  %v362 = vunpack.c.l.b16 %v42
  %v363 = vunpack.c.l.b16 %v43
  %v364 = vunpack.c.l.b16 %v44
  %v365 = vunpack.c.l.b16 %v45
  %v366 = vunpack.c.l.b16 %v46
  %v367 = vunpack.c.l.b16 %v47
  %v368 = vunpack.c.l.b16 %v48
  %v369 = vunpack.c.l.b16 %v49
  %v370 = vunpack.c.l.b16 %v50
  %v371 = vunpack.c.l.b16 %v51
  %v372 = vunpack.c.l.b16 %v52
  %v373 = vunpack.c.l.b16 %v53
  %v374 = vunpack.c.l.b16 %v54
  %v375 = vunpack.c.l.b16 %v55
  %v376 = vunpack.c.l.b16 %v56
  %v377 = vunpack.c.l.b16 %v57
  %v378 = vunpack.c.l.b16 %v58
  %v379 = vunpack.c.l.b16 %v59
  %v380 = vunpack.c.l.b16 %v60
  %v381 = vunpack.c.l.b16 %v61
  %v382 = vunpack.c.l.b16 %v62
  %v383 = vunpack.c.l.b16 %v63
  %v384 = vunpack.c.l.b16 %v64
  %v385 = vunpack.c.l.b16 %v65
  %v386 = vunpack.c.l.b16 %v66
  %v387 = vunpack.c.l.b16 %v67
  %v388 = vunpack.c.l.b16 %v68
  %v389 = vunpack.c.l.b16 %v69
  %v390 = vunpack.c.l.b16 %v70
  %v391 = vunpack.c.l.b16 %v71
  %v392 = vunpack.c.l.b16 %v72
  %v393 = vunpack.c.l.b16 %v73
  %v394 = vunpack.c.l.b16 %v74
  %v395 = vunpack.c.l.b16 %v75
  %v396 = vunpack.c.l.b16 %v76
  %v397 = vunpack.c.l.b16 %v77
  %v398 = vunpack.c.l.b16 %v78
  %v399 = vunpack.c.l.b16 %v79
  %v400 = vunpack.c.l.b16 %v80
  %v401 = vunpack.c.l.b16 %v81
  %v402 = vunpack.c.l.b16 %v82
  %v403 = vunpack.c.l.b16 %v83
  %v404 = vunpack.c.l.b16 %v84
  %v405 = vunpack.c.l.b16 %v85
  %v406 = vunpack.c.l.b16 %v86
  %v407 = vunpack.c.l.b16 %v87
  %v408 = vunpack.c.l.b16 %v88
  %v409 = vunpack.c.l.b16 %v89
  %v410 = vunpack.c.l.b16 %v90
  %v411 = vunpack.c.l.b16 %v91
  %v412 = vunpack.c.l.b16 %v92
  %v413 = vunpack.c.l.b16 %v93
  %v414 = vunpack.c.l.b16 %v94
  %v415 = vunpack.c.l.b16 %v95
  %v416 = vunpack.c.l.b16 %v96
  %v417 = vunpack.c.l.b16 %v97
  %v418 = vunpack.c.l.b16 %v98
  %v419 = vunpack.c.l.b16 %v99
  %v420 = vunpack.c.l.b16 %v100
  %v421 = vunpack.c.l.b16 %v101
  %v422 = vunpack.c.l.b16 %v102
  %v423 = vunpack.c.l.b16 %v103
  %v424 = vunpack.c.l.b16 %v104
  %v425 = vunpack.c.l.b16 %v105
  %v426 = vunpack.c.l.b16 %v106
  %v427 = vunpack.c.l.b16 %v107
  %v428 = vunpack.c.l.b16 %v108
  %v429 = vunpack.c.l.b16 %v109
  %v430 = vunpack.c.l.b16 %v110
  %v431 = vunpack.c.l.b16 %v111
  %v432 = vunpack.c.l.b16 %v112
  %v433 = vunpack.c.l.b16 %v113
  %v434 = vunpack.c.l.b16 %v114
  %v435 = vunpack.c.l.b16 %v115
  %v436 = vunpack.c.l.b16 %v116
  %v437 = vunpack.c.l.b16 %v117
  %v438 = vunpack.c.l.b16 %v118
  %v439 = vunpack.c.l.b16 %v119
  %v440 = vunpack.c.l.b16 %v120
  %v441 = vunpack.c.l.b16 %v121
  %v442 = vunpack.c.l.b16 %v122
  %v443 = vunpack.c.l.b16 %v123
  %v444 = vunpack.c.l.b16 %v124
  %v445 = vunpack.c.l.b16 %v125
  %v446 = vunpack.c.l.b16 %v126
  %v447 = vunpack.c.l.b16 %v127
  %v448 = vunpack.c.l.b16 %v128
  %v449 = vunpack.c.l.b16 %v129
  %v450 = vunpack.c.l.b16 %v130
  %v451 = vunpack.c.l.b16 %v131
  %v452 = vunpack.c.l.b16 %v132
  %v453 = vunpack.c.l.b16 %v133
  %v454 = vunpack.c.l.b16 %v134
  %v455 = vunpack.c.l.b16 %v135
  %v456 = vunpack.c.l.b16 %v136
  %v457 = vunpack.c.l.b16 %v137
  %v458 = vunpack.c.l.b16 %v138
  %v459 = vunpack.c.l.b16 %v139
  %v460 = vunpack.c.l.b16 %v140
  %v461 = vunpack.c.l.b16 %v141
  %v462 = vunpack.c.l.b16 %v142
  %v463 = vunpack.c.l.b16 %v143
  %v464 = vunpack.c.l.b16 %v144
  %v465 = vunpack.c.l.b16 %v145
  %v466 = vunpack.c.l.b16 %v146
  %v467 = vunpack.c.l.b16 %v147
  %v468 = vunpack.c.l.b16 %v148
  %v469 = vunpack.c.l.b16 %v149
  %v470 = vunpack.c.l.b16 %v150
  %v471 = vunpack.c.l.b16 %v151
  %v472 = vunpack.c.l.b16 %v152
  %v473 = vunpack.c.l.b16 %v153
  %v474 = vunpack.c.l.b16 %v154
  %v475 = vunpack.c.l.b16 %v155
  %v476 = vunpack.c.l.b16 %v156
  %v477 = vunpack.c.l.b16 %v157
  %v478 = vunpack.c.l.b16 %v158
  %v479 = vunpack.c.l.b16 %v159
  %v480 = vunpack.c.l.b16 %v160
  %v481 = vunpack.c.l.b16 %v161
  %v482 = vunpack.c.l.b16 %v162
  %v483 = vunpack.c.l.b16 %v163
  %v484 = vunpack.c.l.b16 %v164
  %v485 = vunpack.c.l.b16 %v165
  %v486 = vunpack.c.l.b16 %v166
  %v487 = vunpack.c.l.b16 %v167
  %v488 = vunpack.c.l.b16 %v168
  %v489 = vunpack.c.l.b16 %v169
  %v490 = vunpack.c.l.b16 %v170
  %v491 = vunpack.c.l.b16 %v171
  %v492 = vunpack.c.l.b16 %v172
  %v493 = vunpack.c.l.b16 %v173
  %v494 = vunpack.c.l.b16 %v174
  %v495 = vunpack.c.l.b16 %v175
  %v496 = vunpack.c.l.b16 %v176
  %v497 = vunpack.c.l.b16 %v177
  %v498 = vunpack.c.l.b16 %v178
  %v499 = vunpack.c.l.b16 %v179
  %v500 = vunpack.c.l.b16 %v180
  %v501 = vpack.c.b16 %v358, %v357
  %v502 = vpack.c.b16 %v360, %v359
  %v503 = vpack.c.b16 %v362, %v361
  %v504 = vpack.c.b16 %v364, %v363
  %v505 = vpack.c.b16 %v366, %v365
  %v506 = vpack.c.b16 %v368, %v367
  %v507 = vpack.c.b16 %v370, %v369
  %v508 = vpack.c.b16 %v372, %v371
  %v509 = vpack.c.b16 %v374, %v373
  %v510 = vpack.c.b16 %v376, %v375
  %v511 = vpack.c.b16 %v378, %v377
  %v512 = vpack.c.b16 %v380, %v379
  %v513 = vpack.c.b16 %v382, %v381
  %v514 = vpack.c.b16 %v384, %v383
  %v515 = vpack.c.b16 %v386, %v385
  %v516 = vpack.c.b16 %v388, %v387
  %v517 = vpack.c.b16 %v390, %v389
  %v518 = vpack.c.b16 %v392, %v391
  %v519 = vpack.c.b16 %v394, %v393
  %v520 = vpack.c.b16 %v396, %v395
  %v521 = vpack.c.b16 %v398, %v397
  %v522 = vpack.c.b16 %v400, %v399
  %v523 = vpack.c.b16 %v402, %v401
  %v524 = vpack.c.b16 %v404, %v403
  %v525 = vpack.c.b16 %v406, %v405
  %v526 = vpack.c.b16 %v408, %v407
  %v527 = vpack.c.b16 %v410, %v409
  %v528 = vpack.c.b16 %v412, %v411
  %v529 = vpack.c.b16 %v414, %v413
  %v530 = vpack.c.b16 %v416, %v415
  %v531 = vpack.c.b16 %v418, %v417
  %v532 = vpack.c.b16 %v420, %v419
  %v533 = vpack.c.b16 %v422, %v421
  %v534 = vpack.c.b16 %v424, %v423
  %v535 = vpack.c.b16 %v426, %v425
  %v536 = vpack.c.b16 %v428, %v427
  %v537 = vpack.c.b16 %v430, %v429
  %v538 = vpack.c.b16 %v432, %v431
  %v539 = vpack.c.b16 %v434, %v433
  %v540 = vpack.c.b16 %v436, %v435
  %v541 = vpack.c.b16 %v438, %v437
  %v542 = vpack.c.b16 %v440, %v439
  %v543 = vpack.c.b16 %v442, %v441
  %v544 = vpack.c.b16 %v444, %v443
  %v545 = vpack.c.b16 %v446, %v445
  %v546 = vpack.c.b16 %v448, %v447
  %v547 = vpack.c.b16 %v450, %v449
  %v548 = vpack.c.b16 %v452, %v451
  %v549 = vpack.c.b16 %v454, %v453
  %v550 = vpack.c.b16 %v456, %v455
  %v551 = vpack.c.b16 %v458, %v457
  %v552 = vpack.c.b16 %v460, %v459
  %v553 = vpack.c.b16 %v462, %v461
  %v554 = vpack.c.b16 %v464, %v463
  %v555 = vpack.c.b16 %v466, %v465
  %v556 = vpack.c.b16 %v468, %v467
  %v557 = vpack.c.b16 %v470, %v469
  %v558 = vpack.c.b16 %v472, %v471
  %v559 = vpack.c.b16 %v474, %v473
  %v560 = vpack.c.b16 %v476, %v475
  %v561 = vpack.c.b16 %v478, %v477
  %v562 = vpack.c.b16 %v480, %v479
  %v563 = vpack.c.b16 %v482, %v481
  %v564 = vpack.c.b16 %v484, %v483
  %v565 = vpack.c.b16 %v486, %v485
  %v566 = vpack.c.b16 %v488, %v487
  %v567 = vpack.c.b16 %v490, %v489
  %v568 = vpack.c.b16 %v492, %v491
  %v569 = vpack.c.b16 %v494, %v493
  %v570 = vpack.c.b16 %v496, %v495
  %v571 = vpack.c.b16 %v498, %v497
  %v572 = vpack.c.b16 %v500, %v499
  %645 = vmatprep.subr.bf16.mxu0 0
  %646 = vmatpush1.bf16.msra.mxu0 %v501
  %647 = vmatprep.subr.bf16.mxu0 0
  %648 = vmatpush1.bf16.msra.mxu0 %v502
  %649 = vmatprep.subr.bf16.mxu0 0
  %650 = vmatpush1.bf16.msra.mxu0 %v503
  %651 = vmatprep.subr.bf16.mxu0 0
  %652 = vmatpush1.bf16.msra.mxu0 %v504
  %653 = vmatprep.subr.bf16.mxu0 0
  %654 = vmatpush1.bf16.msra.mxu0 %v505
  %655 = vmatprep.subr.bf16.mxu0 0
  %656 = vmatpush1.bf16.msra.mxu0 %v506
  %657 = vmatprep.subr.bf16.mxu0 0
  %658 = vmatpush1.bf16.msra.mxu0 %v507
  %659 = vmatprep.subr.bf16.mxu0 0
  %660 = vmatpush1.bf16.msra.mxu0 %v508
  %661 = vmatprep.subr.bf16.mxu0 0
  %662 = vmatpush1.bf16.msra.mxu0 %v509
  %663 = vmatprep.subr.bf16.mxu0 0
  %664 = vmatpush1.bf16.msra.mxu0 %v510
  %665 = vmatprep.subr.bf16.mxu0 0
  %666 = vmatpush1.bf16.msra.mxu0 %v511
  %667 = vmatprep.subr.bf16.mxu0 0
  %668 = vmatpush1.bf16.msra.mxu0 %v512
  %669 = vmatprep.subr.bf16.mxu0 0
  %670 = vmatpush1.bf16.msra.mxu0 %v513
  %671 = vmatprep.subr.bf16.mxu0 0
  %672 = vmatpush1.bf16.msra.mxu0 %v514
  %673 = vmatprep.subr.bf16.mxu0 0
  %674 = vmatpush1.bf16.msra.mxu0 %v515
  %675 = vmatprep.subr.bf16.mxu0 0
  %676 = vmatpush1.bf16.msra.mxu0 %v516
  %677 = vmatprep.mubr.bf16.mxu0 %v196
  %678 = vmatmul.mubr.bf16.gmra.mrb[0].mxu0 %v195
  %v679 = vpop.f32.mrb[0].mxu0
  %v680 = vadd.f32 0.0, %v679
  %v681 = vpop.f32.mrb[0].mxu0
  %v682 = vpop.f32.mrb[0].mxu0
  %v683 = vpop.f32.mrb[0].mxu0
  %684 = vdwg.mxu0
  %685 = vmatprep.subr.bf16.mxu0 0
  %686 = vmatpush1.bf16.msra.mxu0 %v517
  %687 = vmatprep.subr.bf16.mxu0 0
  %688 = vmatpush1.bf16.msra.mxu0 %v518
  %689 = vmatprep.subr.bf16.mxu0 0
  %690 = vmatpush1.bf16.msra.mxu0 %v519
  %691 = vmatprep.subr.bf16.mxu0 0
  %692 = vmatpush1.bf16.msra.mxu0 %v520
  %693 = vmatprep.subr.bf16.mxu0 0
  %694 = vmatpush1.bf16.msra.mxu0 %v521
  %695 = vmatprep.subr.bf16.mxu0 0
  %696 = vmatpush1.bf16.msra.mxu0 %v522
  %697 = vmatprep.subr.bf16.mxu0 0
  %698 = vmatpush1.bf16.msra.mxu0 %v523
  %699 = vmatprep.subr.bf16.mxu0 0
  %700 = vmatpush1.bf16.msra.mxu0 %v524
  %701 = vmatprep.subr.bf16.mxu0 0
  %702 = vmatpush1.bf16.msra.mxu0 %v525
  %703 = vmatprep.subr.bf16.mxu0 0
  %704 = vmatpush1.bf16.msra.mxu0 %v526
  %705 = vmatprep.subr.bf16.mxu0 0
  %706 = vmatpush1.bf16.msra.mxu0 %v527
  %707 = vmatprep.subr.bf16.mxu0 0
  %708 = vmatpush1.bf16.msra.mxu0 %v528
  %709 = vmatprep.subr.bf16.mxu0 0
  %710 = vmatpush1.bf16.msra.mxu0 %v529
  %711 = vmatprep.subr.bf16.mxu0 0
  %712 = vmatpush1.bf16.msra.mxu0 %v530
  %713 = vmatprep.subr.bf16.mxu0 0
  %714 = vmatpush1.bf16.msra.mxu0 %v531
  %715 = vmatprep.subr.bf16.mxu0 0
  %716 = vmatpush1.bf16.msra.mxu0 %v532
  %717 = vmatprep.mubr.bf16.mxu0 %v198
  %718 = vmatmul.mubr.bf16.gmra.mrb[0].mxu0 %v197
  %v719 = vpop.f32.mrb[0].mxu0
  %v720 = vadd.f32 %v680, %v719
  %v721 = vpop.f32.mrb[0].mxu0
  %v722 = vpop.f32.mrb[0].mxu0
  %v723 = vpop.f32.mrb[0].mxu0
  %724 = vdwg.mxu0
  %725 = vmatprep.subr.bf16.mxu0 0
  %726 = vmatpush1.bf16.msra.mxu0 %v533
  %727 = vmatprep.subr.bf16.mxu0 0
  %728 = vmatpush1.bf16.msra.mxu0 %v534
  %729 = vmatprep.subr.bf16.mxu0 0
  %730 = vmatpush1.bf16.msra.mxu0 %v535
  %731 = vmatprep.subr.bf16.mxu0 0
  %732 = vmatpush1.bf16.msra.mxu0 %v536
  %733 = vmatprep.subr.bf16.mxu0 0
  %734 = vmatpush1.bf16.msra.mxu0 %v537
  %735 = vmatprep.subr.bf16.mxu0 0
  %736 = vmatpush1.bf16.msra.mxu0 %v538
  %737 = vmatprep.subr.bf16.mxu0 0
  %738 = vmatpush1.bf16.msra.mxu0 %v539
  %739 = vmatprep.subr.bf16.mxu0 0
  %740 = vmatpush1.bf16.msra.mxu0 %v540
  %741 = vmatprep.subr.bf16.mxu0 0
  %742 = vmatpush1.bf16.msra.mxu0 %v541
  %743 = vmatprep.subr.bf16.mxu0 0
  %744 = vmatpush1.bf16.msra.mxu0 %v542
  %745 = vmatprep.subr.bf16.mxu0 0
  %746 = vmatpush1.bf16.msra.mxu0 %v543
  %747 = vmatprep.subr.bf16.mxu0 0
  %748 = vmatpush1.bf16.msra.mxu0 %v544
  %749 = vmatprep.subr.bf16.mxu0 0
  %750 = vmatpush1.bf16.msra.mxu0 %v545
  %751 = vmatprep.subr.bf16.mxu0 0
  %752 = vmatpush1.bf16.msra.mxu0 %v546
  %753 = vmatprep.subr.bf16.mxu0 0
  %754 = vmatpush1.bf16.msra.mxu0 %v547
  %755 = vmatprep.subr.bf16.mxu0 0
  %756 = vmatpush1.bf16.msra.mxu0 %v548
  %757 = vmatprep.mubr.bf16.mxu0 %v200
  %758 = vmatmul.mubr.bf16.gmra.mrb[0].mxu0 %v199
  %v759 = vpop.f32.mrb[0].mxu0
  %v760 = vadd.f32 %v720, %v759
  %v761 = vpop.f32.mrb[0].mxu0
  %v762 = vpop.f32.mrb[0].mxu0
  %v763 = vpop.f32.mrb[0].mxu0
  %764 = vdwg.mxu0
  %765 = vmatprep.subr.bf16.mxu0 0
  %766 = vmatpush1.bf16.msra.mxu0 %v549
  %767 = vmatprep.subr.bf16.mxu0 0
  %768 = vmatpush1.bf16.msra.mxu0 %v550
  %769 = vmatprep.subr.bf16.mxu0 0
  %770 = vmatpush1.bf16.msra.mxu0 %v551
  %771 = vmatprep.subr.bf16.mxu0 0
  %772 = vmatpush1.bf16.msra.mxu0 %v552
  %773 = vmatprep.subr.bf16.mxu0 0
  %774 = vmatpush1.bf16.msra.mxu0 %v553
  %775 = vmatprep.subr.bf16.mxu0 0
  %776 = vmatpush1.bf16.msra.mxu0 %v554
  %777 = vmatprep.subr.bf16.mxu0 0
  %778 = vmatpush1.bf16.msra.mxu0 %v555
  %779 = vmatprep.subr.bf16.mxu0 0
  %780 = vmatpush1.bf16.msra.mxu0 %v556
  %781 = vmatprep.subr.bf16.mxu0 0
  %782 = vmatpush1.bf16.msra.mxu0 %v557
  %783 = vmatprep.subr.bf16.mxu0 0
  %784 = vmatpush1.bf16.msra.mxu0 %v558
  %785 = vmatprep.subr.bf16.mxu0 0
  %786 = vmatpush1.bf16.msra.mxu0 %v559
  %787 = vmatprep.subr.bf16.mxu0 0
  %788 = vmatpush1.bf16.msra.mxu0 %v560
  %789 = vmatprep.subr.bf16.mxu0 0
  %790 = vmatpush1.bf16.msra.mxu0 %v561
  %791 = vmatprep.subr.bf16.mxu0 0
  %792 = vmatpush1.bf16.msra.mxu0 %v562
  %793 = vmatprep.subr.bf16.mxu0 0
  %794 = vmatpush1.bf16.msra.mxu0 %v563
  %795 = vmatprep.subr.bf16.mxu0 0
  %796 = vmatpush1.bf16.msra.mxu0 %v564
  %797 = vmatprep.mubr.bf16.mxu0 %v202
  %798 = vmatmul.mubr.bf16.gmra.mrb[0].mxu0 %v201
  %v799 = vpop.f32.mrb[0].mxu0
  %v800 = vadd.f32 %v760, %v799
  %v801 = vpop.f32.mrb[0].mxu0
  %v802 = vpop.f32.mrb[0].mxu0
  %v803 = vpop.f32.mrb[0].mxu0
  %804 = vdwg.mxu0
  %805 = vmatprep.subr.bf16.mxu0 0
  %806 = vmatpush1.bf16.msra.mxu0 %v565
  %807 = vmatprep.subr.bf16.mxu0 0
  %808 = vmatpush1.bf16.msra.mxu0 %v566
  %809 = vmatprep.subr.bf16.mxu0 0
  %810 = vmatpush1.bf16.msra.mxu0 %v567
  %811 = vmatprep.subr.bf16.mxu0 0
  %812 = vmatpush1.bf16.msra.mxu0 %v568
  %813 = vmatprep.subr.bf16.mxu0 0
  %814 = vmatpush1.bf16.msra.mxu0 %v569
  %815 = vmatprep.subr.bf16.mxu0 0
  %816 = vmatpush1.bf16.msra.mxu0 %v570
  %817 = vmatprep.subr.bf16.mxu0 0
  %818 = vmatpush1.bf16.msra.mxu0 %v571
  %819 = vmatprep.subr.bf16.mxu0 0
  %820 = vmatpush1.bf16.msra.mxu0 %v572
  %821 = vmatprep.subr.bf16.mxu0 0
  %822 = vmatpush1.bf16.msra.mxu0 0
  %823 = vmatprep.subr.bf16.mxu0 0
  %824 = vmatpush1.bf16.msra.mxu0 0
  %825 = vmatprep.subr.bf16.mxu0 0
  %826 = vmatpush1.bf16.msra.mxu0 0
  %827 = vmatprep.subr.bf16.mxu0 0
  %828 = vmatpush1.bf16.msra.mxu0 0
  %829 = vmatprep.subr.bf16.mxu0 0
  %830 = vmatpush1.bf16.msra.mxu0 0
  %831 = vmatprep.subr.bf16.mxu0 0
  %832 = vmatpush1.bf16.msra.mxu0 0
  %833 = vmatprep.subr.bf16.mxu0 0
  %834 = vmatpush1.bf16.msra.mxu0 0
  %835 = vmatprep.subr.bf16.mxu0 0
  %836 = vmatpush1.bf16.msra.mxu0 0
  %837 = vmatprep.mubr.bf16.mxu0 0
  %838 = vmatmul.mubr.bf16.gmra.mrb[0].mxu0 %v203
  %v839 = vpop.f32.mrb[0].mxu0
  %v840 = vadd.f32 %v800, %v839
  %v841 = vpop.f32.mrb[0].mxu0
  %v842 = vpop.f32.mrb[0].mxu0
  %v843 = vpop.f32.mrb[0].mxu0
  %844 = vdwg.mxu0
  %v845 = vrot.slane %v840, 4
  %v846 = vadd.f32 %v840, %v845
  %v847 = vrot.slane %v846, 2
  %v848 = vadd.f32 %v846, %v847
  %v849 = vrot.slane %v848, 1
  %v850 = vadd.f32 %v848, %v849
  %v851 = vrcp.pop 8.0
  %v852 = vmul.f32 %v850, %v851
  %v853 = vmul.f32 %v840, %v840
  %v854 = vrot.slane %v853, 4
  %v855 = vadd.f32 %v853, %v854
  %v856 = vrot.slane %v855, 2
  %v857 = vadd.f32 %v855, %v856
  %v858 = vrot.slane %v857, 1
  %v859 = vadd.f32 %v857, %v858
  %v860 = vmul.f32 %v859, %v851
  %v861 = vmul.f32 %v852, %v852
  %v862 = vsub.f32 %v860, %v861
  %v863 = vadd.f32 %v862, 1e-05
  %v864 = vrsqrt.pop %v863
  %v865 = vld [vmem:[%s2] sm:$0x1]
  %v866 = vmul.f32 %v865, %v864
  %v867 = vld [vmem:[%s3] sm:$0x1]
  %v868 = vmul.f32 %v852, %v866
  %v869 = vsub.f32 %v867, %v868
  %v871 = vlaneseq
  %v872 = vshrl.u32 %v871, 7
  %v873 = vsub.s32 0, %v872
  %v874 = vrot.slane %v866, %v873
  %v876 = vmul.f32 %v840, %v874
  %v878 = vlaneseq
  %v879 = vshrl.u32 %v878, 7
  %v880 = vsub.s32 0, %v879
  %v881 = vrot.slane %v869, %v880
  %v883 = vadd.f32 %v876, %v881
  %v884 = vmax.f32 %v883, 0.0
  %v886 = vrot.slane %v884, 2
  %v888 = vmax.f32 %v884, %v886
  %v890 = vrot.slane %v888, 4
  %v892 = vmax.f32 %v888, %v890
  %v893 = vld [vmem:[%s4] sm:$0xff]
  %v894 = vld [vmem:[%s4 + $0x8] sm:$0xff]
  %v895 = vld [vmem:[%s4 + $0x10] sm:$0xff]
  %v896 = vld [vmem:[%s4 + $0x18] sm:$0xff]
  %v897 = vld [vmem:[%s4 + $0x20] sm:$0xff]
  %v898 = vld [vmem:[%s4 + $0x28] sm:$0xff]
  %v899 = vld [vmem:[%s4 + $0x30] sm:$0xff]
  %v900 = vld [vmem:[%s4 + $0x38] sm:$0xff]
  %v901 = vld [vmem:[%s4 + $0x40] sm:$0xff]
  %v902 = vld [vmem:[%s4 + $0x48] sm:$0xff]
  %v903 = vld [vmem:[%s4 + $0x50] sm:$0xff]
  %v904 = vld [vmem:[%s4 + $0x58] sm:$0xff]
  %v905 = vld [vmem:[%s4 + $0x60] sm:$0xff]
  %v906 = vld [vmem:[%s4 + $0x68] sm:$0xff]
  %v907 = vld [vmem:[%s4 + $0x70] sm:$0xff]
  %v908 = vld [vmem:[%s4 + $0x78] sm:$0xff]
  %v909 = vld [vmem:[%s5] sm:$0x1]
  %v911 = vlaneseq
  %v912 = vshrl.u32 %v911, 7
  %v913 = vsub.s32 0, %v912
  %v914 = vrot.slane %v909, %v913
  %916 = vmatprep.subr.mxu0 0.0
  %917 = vmatpush1.msra.mxu0 %v893
  %918 = vmatprep.subr.mxu0 0.0
  %919 = vmatpush1.msra.mxu0 %v894
  %920 = vmatprep.subr.mxu0 0.0
  %921 = vmatpush1.msra.mxu0 %v895
  %922 = vmatprep.subr.mxu0 0.0
  %923 = vmatpush1.msra.mxu0 %v896
  %924 = vmatprep.subr.mxu0 0.0
  %925 = vmatpush1.msra.mxu0 %v897
  %926 = vmatprep.subr.mxu0 0.0
  %927 = vmatpush1.msra.mxu0 %v898
  %928 = vmatprep.subr.mxu0 0.0
  %929 = vmatpush1.msra.mxu0 %v899
  %930 = vmatprep.subr.mxu0 0.0
  %931 = vmatpush1.msra.mxu0 %v900
  %932 = vmatprep.subr.mxu0 0.0
  %933 = vmatpush1.msra.mxu0 %v901
  %934 = vmatprep.subr.mxu0 0.0
  %935 = vmatpush1.msra.mxu0 %v902
  %936 = vmatprep.subr.mxu0 0.0
  %937 = vmatpush1.msra.mxu0 %v903
  %938 = vmatprep.subr.mxu0 0.0
  %939 = vmatpush1.msra.mxu0 %v904
  %940 = vmatprep.subr.mxu0 0.0
  %941 = vmatpush1.msra.mxu0 %v905
  %942 = vmatprep.subr.mxu0 0.0
  %943 = vmatpush1.msra.mxu0 %v906
  %944 = vmatprep.subr.mxu0 0.0
  %945 = vmatpush1.msra.mxu0 %v907
  %946 = vmatprep.subr.mxu0 0.0
  %947 = vmatpush1.msra.mxu0 %v908
  %948 = vmatprep.subr.mxu0 0.0
  %949 = vmatpush1.msra.mxu0 0.0
  %950 = vmatprep.subr.mxu0 0.0
  %951 = vmatpush1.msra.mxu0 0.0
  %952 = vmatprep.subr.mxu0 0.0
  %953 = vmatpush1.msra.mxu0 0.0
  %954 = vmatprep.subr.mxu0 0.0
  %955 = vmatpush1.msra.mxu0 0.0
  %956 = vmatprep.subr.mxu0 0.0
  %957 = vmatpush1.msra.mxu0 0.0
  %958 = vmatprep.subr.mxu0 0.0
  %959 = vmatpush1.msra.mxu0 0.0
  %960 = vmatprep.subr.mxu0 0.0
  %961 = vmatpush1.msra.mxu0 0.0
  %962 = vmatprep.subr.mxu0 0.0
  %963 = vmatpush1.msra.mxu0 0.0
  %964 = vmatprep.subr.mxu0 0.0
  %965 = vmatpush1.msra.mxu0 0.0
  %966 = vmatprep.subr.mxu0 0.0
  %967 = vmatpush1.msra.mxu0 0.0
  %968 = vmatprep.subr.mxu0 0.0
  %969 = vmatpush1.msra.mxu0 0.0
  %970 = vmatprep.subr.mxu0 0.0
  %971 = vmatpush1.msra.mxu0 0.0
  %972 = vmatprep.subr.mxu0 0.0
  %973 = vmatpush1.msra.mxu0 0.0
  %974 = vmatprep.subr.mxu0 0.0
  %975 = vmatpush1.msra.mxu0 0.0
  %976 = vmatprep.subr.mxu0 0.0
  %977 = vmatpush1.msra.mxu0 0.0
  %978 = vmatprep.subr.mxu0 0.0
  %979 = vmatpush1.msra.mxu0 0.0
  %980 = vmatprep.mubr.f32.mxu0 0.0
  %981 = vmatmul.mubr.f32.gmra.mrb[0].mxu0 %v892
  %v982 = vpop.f32.mrb[0].mxu0
  %v983 = vadd.f32 %v914, %v982
  %v984 = vpop.f32.mrb[0].mxu0
  %985 = vdwg.mxu0
  %v986 = vmax.f32 %v983, 0.0
  %v987 = vld [vmem:[%s6] sm:$0x1]
  %v989 = vlaneseq
  %v990 = vshrl.u32 %v989, 7
  %v991 = vsub.s32 0, %v990
  %v992 = vrot.slane %v987, %v991
  %v994 = vmul.f32 %v986, %v992
  %vm995 = vcmask 1041408
  %v996 = vsel %vm995, %v994, 0.0
  %997 = vadd.xlane.f32.xlu0 %v996
  %v998 = vpop.xlane.xlu0 %997
  %v999 = vld [vmem:[#allocation2] sm:$0x1]
  %v1001 = vlaneseq
  %v1002 = vshrl.u32 %v1001, 7
  %v1003 = vsub.s32 0, %v1002
  %v1004 = vrot.slane %v999, %v1003
  %v1006 = vadd.f32 %v998, %v1004
  %v1007 = vxor.u32 %v1006, 2147483648
  %v1008 = vmul.f32 %v1007, 1.442695
  %v1009 = vpow.pop %v1008
  %v1010 = vadd.f32 %v1009, 1.0
  %v1011 = vrcp.pop %v1010
  %v1012 = vmul.f32 1.0, %v1011
  %vm1013 = vcmask 1024
  %1014 = vst.msk [vmem:[%s8] sm:$0x3] %vm1013, %v1012
  // Predicated region
  $region34: #{relation_network_forward.3} parent=0 // pred_check
    _
  $region35: #{relation_network_forward.3} parent=0 // pred_check_branch
    %1016 = sbr.rel (0) target = $region37
  $region36: #{relation_network_forward.3} parent=0 // pred_region
    _
  $region37: #{relation_network_forward.3} parent=0 // pred_fallthru
    _
  // Predicated region
  $region38: #{relation_network_forward.3} parent=0 // pred_check
    _
  $region39: #{relation_network_forward.3} parent=0 // pred_check_branch
    %1018 = sbr.rel (0) target = $region41
  $region40: #{relation_network_forward.3} parent=0 // pred_region
    _
  $region41: #{relation_network_forward.3} parent=0 // pred_fallthru
    _

</llo_original>
